<compile_context>
chip_gen: v7x
topology: tpu7x:2x2x1
jax: 0.10.0
libtpu: 0.0.40
codegen_flags: <defaults>
</compile_context>

<pallas_src>
import numpy as np
import jax
import jax.numpy as jnp
from jax import lax
from jax.experimental import pallas as pl
from jax.experimental.pallas import tpu as pltpu

BN_EPS = 1e-5
LANE = 128


def _round_up(x, m):
    return ((x + m - 1) // m) * m


# ---------------------------------------------------------------------------
# Pallas kernel: one (batch-block, output-column-tile) step.
#   x_ref: (NB, Hp, K)    bf16  padded NHWC rows, channel-minor (K = Wp*Cin)
#   w_ref: (3, 3, K, CT)  bf16  (op-group, dh-tap, contraction, output columns)
#   o_ref: (NB, H, CT)    f32   CT columns of the lane-padded W*Cout output slab
# ---------------------------------------------------------------------------
def _evolvable_block_kernel(x_ref, w_ref, o_ref):
    nb, h, ct = o_ref.shape
    k = x_ref.shape[2]

    # Single whole-tile load + ONE upcast; the three dh-tap row windows are then plain
    # f32 sublane slices (robust at odd offsets for packed layouts) and are cast to
    # bf16 right at the MXU.  Accumulation / ReLU / op-sum stay in f32.
    xf = x_ref[...].astype(jnp.float32)
    lhs = [xf[:, dh:dh + h, :].reshape(nb * h, k).astype(jnp.bfloat16)
           for dh in range(3)]

    out = jnp.zeros((nb * h, ct), jnp.float32)
    for g in range(3):                          # three candidate ops (weights pre-folded)
        acc = jnp.zeros((nb * h, ct), jnp.float32)
        for dh in range(3):                     # sequential accumulate (MRB-friendly, v7x)
            acc = acc + jnp.dot(lhs[dh], w_ref[g, dh, :, :],
                                preferred_element_type=jnp.float32)
        out = out + jnp.maximum(acc, 0.0)       # sw[g]*ReLU(y) == ReLU(sw[g]*y), sw[g] > 0
    o_ref[...] = out.reshape(nb, h, ct).astype(o_ref.dtype)
    # TODO(synk): v6e deep-K variant — concatenate the 3 dh slices along lanes and do one
    # (nb*h, 3K) x (3K, CT) dot per op group to better fill the 256-deep MXU columns.


# ---------------------------------------------------------------------------
# Weight folding: all three ops + BN (eval mode) + softmax(op_weights) into one
# bf16 block-Toeplitz weight of shape (3 ops, 3 dh-taps, Wp*Cin, WCp), where
#   bmat[g, dh, (w+dw)*Cin + ci, w*Cout + co] = kcat[g, dh, dw, ci, co]
# Built sparsely (one static-index scatter) and meant to be computed ONCE per set
# of parameters and reused across forward calls.
# ---------------------------------------------------------------------------
def fold_weights(params, W):
    w3x3 = params["w3x3"]          # (Cout, Cin, 3, 3)   torch OIHW
    w1x1 = params["w1x1"]          # (Cout, Cin, 1, 1)
    wdw = params["wdw"]            # (Cin, 1, 3, 3)      depthwise
    wpw = params["wpw"]            # (Cout, Cin, 1, 1)   pointwise
    Cout, Cin = w3x3.shape[0], w3x3.shape[1]
    Wp = W + 2
    K = Wp * Cin
    WC = W * Cout
    WCp = _round_up(WC, LANE)      # lane-dense output columns -> unmasked stores

    sw = jax.nn.softmax(params["op_weights"]).astype(jnp.float32)   # strictly positive
    bn_scale = 1.0 / np.sqrt(1.0 + BN_EPS)                          # eval-mode fresh stats

    # per-op 3x3-equivalent kernels (dh, dw, Cin, Cout)
    k3 = jnp.transpose(w3x3, (2, 3, 1, 0))
    k1 = jnp.zeros((3, 3, Cin, Cout), jnp.float32).at[1, 1].set(w1x1[:, :, 0, 0].T)
    k2 = jnp.transpose(wdw[:, 0], (1, 2, 0))[..., None] * wpw[:, :, 0, 0].T[None, None]
    kcat = jnp.stack([sw[0] * k3, sw[1] * k1, sw[2] * k2], axis=0) * bn_scale  # (g,dh,dw,ci,co)

    # static scatter indices (host-side numpy; no duplicate (row, col) pairs)
    w_i = np.arange(W)[:, None, None, None]
    dw_i = np.arange(3)[None, :, None, None]
    ci_i = np.arange(Cin)[None, None, :, None]
    co_i = np.arange(Cout)[None, None, None, :]
    rows, cols = np.broadcast_arrays((w_i + dw_i) * Cin + ci_i,        # (W,3,Cin,Cout)
                                     w_i * Cout + co_i)

    vals = jnp.broadcast_to(kcat[:, :, None], (3, 3, W, 3, Cin, Cout))
    bmat = jnp.zeros((3, 3, K, WCp), jnp.float32).at[:, :, rows, cols].set(vals)
    return bmat.astype(jnp.bfloat16)


def _pick_batch_block(N, hp, k, h, wcp, budget_bytes=8 << 20):
    """Largest divisor of N that keeps >= 2 grid steps (megacore) and fits the budget."""
    best = 1
    for nb in range(1, N + 1):
        if N % nb:
            continue
        if N >= 2 and N // nb < 2:
            continue
        if 2 * (nb * hp * k * 2 + nb * h * wcp * 4) > budget_bytes:
            continue
        best = nb
    return best


def _pick_col_tile(wcp, k, budget_bytes=4 << 20):
    """Output-column tile (multiple of 128, divides wcp) bounding the weight block size."""
    ct = wcp
    while ct > LANE and 9 * k * ct * 2 > budget_bytes:
        half = ct // 2
        if half % LANE != 0 or wcp % half != 0:
            break
        ct = half
    return ct


# ---------------------------------------------------------------------------
# Wrapper: padding, pallas_call, skip connection.
# ---------------------------------------------------------------------------
def evolvable_block_forward(x_nchw, params, skip_input=None, stride=1, folded=None,
                            out_dtype=jnp.float32):
    N, Cin, H, W = x_nchw.shape
    Cout = params["w3x3"].shape[0]
    Hp, Wp = H + 2, W + 2
    K = Wp * Cin
    WC = W * Cout

    bmat = folded if folded is not None else fold_weights(params, W)
    assert bmat.shape[2] == K, "folded weight does not match input width"
    WCp = bmat.shape[3]

    NB = _pick_batch_block(N, Hp, K, H, WCp)
    CT = _pick_col_tile(WCp, K)
    grid = (N // NB, WCp // CT)

    # input: NCHW -> padded NHWC, rows flattened channel-minor, bf16 (halves HBM->VMEM bytes)
    x = jnp.transpose(x_nchw, (0, 2, 3, 1))
    xp = jnp.pad(x, ((0, 0), (1, 1), (1, 1), (0, 0))).reshape(N, Hp, K).astype(jnp.bfloat16)

    def run(single_buffer_weight):
        w_kwargs = {"pipeline_mode": pl.Buffered(1)} if single_buffer_weight else {}
        w_bufs = 1 if single_buffer_weight else 2
        x_blk = NB * Hp * K * 2
        w_blk = 9 * K * CT * 2
        o_blk = NB * H * CT * np.dtype(out_dtype).itemsize
        vmem_limit = int(min(max(2 * x_blk + w_bufs * w_blk + 2 * o_blk + (4 << 20),
                                 8 << 20), 100 << 20))
        return pl.pallas_call(
            _evolvable_block_kernel,
            out_shape=jax.ShapeDtypeStruct((N, H, WCp), out_dtype),
            grid=grid,
            in_specs=[
                pl.BlockSpec((NB, Hp, K), lambda n, j: (n, 0, 0)),
                pl.BlockSpec((3, 3, K, CT), lambda n, j: (0, 0, 0, j), **w_kwargs),
            ],
            out_specs=pl.BlockSpec((NB, H, CT), lambda n, j: (n, 0, j)),
            compiler_params=pltpu.CompilerParams(
                dimension_semantics=("parallel", "parallel"),
                vmem_limit_bytes=vmem_limit,
            ),
            cost_estimate=pl.CostEstimate(
                flops=int(2 * N * 9 * H * K * WCp),
                transcendentals=0,
                bytes_accessed=int(N * Hp * K * 2 + 9 * K * WCp * 2
                                   + N * H * WCp * np.dtype(out_dtype).itemsize),
            ),
        )(xp, bmat)

    # single-buffer the weight only when its index map is constant (one column tile);
    # fall back to default double-buffering if Buffered(1) is unsupported.
    if grid[1] == 1 and hasattr(pl, "Buffered"):
        try:
            out_flat = jax.block_until_ready(run(True))
        except Exception:
            out_flat = run(False)
    else:
        out_flat = run(False)

    out = (out_flat[:, :, :WC].reshape(N, H, W, Cout)
           .transpose(0, 3, 1, 2).astype(jnp.float32))
    if stride != 1:
        # TODO(synk): stride>1 computes the stride-1 map and subsamples (correct for k=3,p=1,
        # but does stride^2 extra MXU work).
        out = out[:, :, ::stride, ::stride]

    # --- skip-connection glue (plain JAX, fully traced; gated on equal channel counts,
    #     so the elif-branch F.pad in the PyTorch module is an identity) ---
    if skip_input is not None and skip_input.shape[1] == out.shape[1]:
        ssw = jax.nn.softmax(params["skip_weights"])
        if skip_input.shape[2:] != out.shape[2:]:
            fh = skip_input.shape[2] // out.shape[2]
            fw = skip_input.shape[3] // out.shape[3]
            # TODO(synk): adaptive_avg_pool2d only supported for integer downsample factors.
            skip_input = skip_input.reshape(skip_input.shape[0], skip_input.shape[1],
                                            out.shape[2], fh, out.shape[3], fw).mean(axis=(3, 5))
        coef = jnp.where(ssw[1] > 0.5, ssw[1], jnp.where(ssw[2] > 0.3, ssw[2], 0.0))
        out = out + coef * skip_input
    return out


# ---------------------------------------------------------------------------
# Plain-JAX reference (mirrors the PyTorch forward, skip_input=None path).
# ---------------------------------------------------------------------------
def reference_forward(x, params, stride=1):
    sw = jax.nn.softmax(params["op_weights"])
    bn = lambda y: y * (1.0 / jnp.sqrt(1.0 + BN_EPS))
    dn = lambda lhs, rhs: lax.conv_dimension_numbers(lhs.shape, rhs.shape, ("NCHW", "OIHW", "NCHW"))
    y1 = jax.nn.relu(bn(lax.conv_general_dilated(
        x, params["w3x3"], (stride, stride), ((1, 1), (1, 1)),
        dimension_numbers=dn(x, params["w3x3"]))))
    y2 = jax.nn.relu(bn(lax.conv_general_dilated(
        x, params["w1x1"], (stride, stride), ((0, 0), (0, 0)),
        dimension_numbers=dn(x, params["w1x1"]))))
    d = lax.conv_general_dilated(
        x, params["wdw"], (stride, stride), ((1, 1), (1, 1)),
        dimension_numbers=dn(x, params["wdw"]), feature_group_count=x.shape[1])
    y3 = jax.nn.relu(bn(lax.conv_general_dilated(
        d, params["wpw"], (1, 1), ((0, 0), (0, 0)),
        dimension_numbers=dn(d, params["wpw"]))))
    return sw[0] * y1 + sw[1] * y2 + sw[2] * y3


def init_params(keys, Cin, Cout):
    k3, k1, kdw, kpw, kop, ksk = keys
    return {
        "w3x3": jax.random.normal(k3, (Cout, Cin, 3, 3), jnp.float32) / np.sqrt(Cin * 9),
        "w1x1": jax.random.normal(k1, (Cout, Cin, 1, 1), jnp.float32) / np.sqrt(Cin),
        "wdw":  jax.random.normal(kdw, (Cin, 1, 3, 3), jnp.float32) / 3.0,
        "wpw":  jax.random.normal(kpw, (Cout, Cin, 1, 1), jnp.float32) / np.sqrt(Cin),
        "op_weights":   jax.random.normal(kop, (3,), jnp.float32),
        "skip_weights": jax.random.normal(ksk, (3,), jnp.float32),
    }


if __name__ == "__main__":
    key = jax.random.PRNGKey(0)
    N, Cin, Cout, H, W = 2, 4, 4, 16, 16
    keys = jax.random.split(key, 7)
    x = jax.random.normal(keys[0], (N, Cin, H, W), jnp.float32)
    params = init_params(list(keys[1:]), Cin, Cout)

    # fold once, reuse across calls (review: don't rebuild the Toeplitz weight per forward)
    folded = fold_weights(params, W)

    out = jax.block_until_ready(evolvable_block_forward(x, params, folded=folded))
    assert out.shape == (N, Cout, H, W), out.shape

    ref = jax.block_until_ready(reference_forward(x, params))
    np.testing.assert_allclose(np.asarray(out), np.asarray(ref), rtol=5e-2, atol=5e-2)

    # skip-connection path: compare against the PyTorch if/elif semantics evaluated on host
    out_skip = jax.block_until_ready(
        evolvable_block_forward(x, params, skip_input=x, folded=folded))
    ssw = np.asarray(jax.nn.softmax(params["skip_weights"]))
    ref_skip = np.asarray(ref).copy()
    if ssw[1] > 0.5:
        ref_skip = ref_skip + ssw[1] * np.asarray(x)
    elif ssw[2] > 0.3:
        ref_skip = ref_skip + ssw[2] * np.asarray(x)   # channel pad is identity (Cin == Cout)
    np.testing.assert_allclose(np.asarray(out_skip), ref_skip, rtol=5e-2, atol=5e-2)

    print("KERNEL_OK")
</pallas_src>

<mosaic_0001>
module attributes {stable_mosaic.version = 11 : i64} {
  func.func @_evolvable_block_kernel(%arg0: i32, %arg1: i32, %arg2: memref<1x18x72xbf16, #tpu.memory_space<vmem>>, %arg3: memref<3x3x72x128xbf16, #tpu.memory_space<vmem>>, %arg4: memref<1x16x128xf32, #tpu.memory_space<vmem>>) attributes {dimension_semantics = [#tpu.dimension_semantics<parallel>, #tpu.dimension_semantics<parallel>], iteration_bounds = array<i64: 2, 1>, scalar_prefetch = 0 : i64, scratch_operands = 0 : i64, tpu.core_type = #tpu.core_type<tc>, window_params = [{transform_indices = @transform_0, window_bounds = array<i64: 1, 18, 72>}, {pipeline_mode = #tpu.pipeline_mode<synchronous>, transform_indices = @transform_1, window_bounds = array<i64: 3, 3, 72, 128>}, {transform_indices = @transform_2, window_bounds = array<i64: 1, 16, 128>}]} {
    %c0 = arith.constant 0 : index
    %c0_0 = arith.constant 0 : index
    %c0_1 = arith.constant 0 : index
    %0 = vector.load %arg2[%c0, %c0_0, %c0_1] : memref<1x18x72xbf16, #tpu.memory_space<vmem>>, vector<1x18x72xbf16>
    %1 = arith.extf %0 : vector<1x18x72xbf16> to vector<1x18x72xf32>
    %2 = vector.extract_strided_slice %1 {offsets = [0, 0, 0], sizes = [1, 16, 72], strides = [1, 1, 1]} : vector<1x18x72xf32> to vector<1x16x72xf32>
    %3 = vector.shape_cast %2 : vector<1x16x72xf32> to vector<16x72xf32>
    %4 = arith.truncf %3 : vector<16x72xf32> to vector<16x72xbf16>
    %5 = vector.extract_strided_slice %1 {offsets = [0, 1, 0], sizes = [1, 16, 72], strides = [1, 1, 1]} : vector<1x18x72xf32> to vector<1x16x72xf32>
    %6 = vector.shape_cast %5 : vector<1x16x72xf32> to vector<16x72xf32>
    %7 = arith.truncf %6 : vector<16x72xf32> to vector<16x72xbf16>
    %8 = vector.extract_strided_slice %1 {offsets = [0, 2, 0], sizes = [1, 16, 72], strides = [1, 1, 1]} : vector<1x18x72xf32> to vector<1x16x72xf32>
    %9 = vector.shape_cast %8 : vector<1x16x72xf32> to vector<16x72xf32>
    %10 = arith.truncf %9 : vector<16x72xf32> to vector<16x72xbf16>
    %cst = arith.constant 0.000000e+00 : f32
    %11 = vector.broadcast %cst : f32 to vector<16x128xf32>
    %cst_2 = arith.constant 0.000000e+00 : f32
    %12 = vector.broadcast %cst_2 : f32 to vector<16x128xf32>
    %c0_3 = arith.constant 0 : index
    %c0_4 = arith.constant 0 : index
    %c0_5 = arith.constant 0 : index
    %c0_6 = arith.constant 0 : index
    %13 = vector.load %arg3[%c0_3, %c0_4, %c0_5, %c0_6] : memref<3x3x72x128xbf16, #tpu.memory_space<vmem>>, vector<1x1x72x128xbf16>
    %14 = vector.shape_cast %13 : vector<1x1x72x128xbf16> to vector<72x128xbf16>
    %cst_7 = arith.constant dense<0.000000e+00> : vector<16x128xf32>
    %15 = tpu.matmul %4, %14, %cst_7 {dimension_numbers = #tpu.dot_dimension_numbers<[1], [0], [0], [1], [0, 0, 1, 1], [], []>} : vector<16x72xbf16>, vector<72x128xbf16>, vector<16x128xf32> -> vector<16x128xf32>
    %16 = arith.addf %12, %15 : vector<16x128xf32>
    %c0_8 = arith.constant 0 : index
    %c1 = arith.constant 1 : index
    %c0_9 = arith.constant 0 : index
    %c0_10 = arith.constant 0 : index
    %17 = vector.load %arg3[%c0_8, %c1, %c0_9, %c0_10] : memref<3x3x72x128xbf16, #tpu.memory_space<vmem>>, vector<1x1x72x128xbf16>
    %18 = vector.shape_cast %17 : vector<1x1x72x128xbf16> to vector<72x128xbf16>
    %cst_11 = arith.constant dense<0.000000e+00> : vector<16x128xf32>
    %19 = tpu.matmul %7, %18, %cst_11 {dimension_numbers = #tpu.dot_dimension_numbers<[1], [0], [0], [1], [0, 0, 1, 1], [], []>} : vector<16x72xbf16>, vector<72x128xbf16>, vector<16x128xf32> -> vector<16x128xf32>
    %20 = arith.addf %16, %19 : vector<16x128xf32>
    %c0_12 = arith.constant 0 : index
    %c2 = arith.constant 2 : index
    %c0_13 = arith.constant 0 : index
    %c0_14 = arith.constant 0 : index
    %21 = vector.load %arg3[%c0_12, %c2, %c0_13, %c0_14] : memref<3x3x72x128xbf16, #tpu.memory_space<vmem>>, vector<1x1x72x128xbf16>
    %22 = vector.shape_cast %21 : vector<1x1x72x128xbf16> to vector<72x128xbf16>
    %cst_15 = arith.constant dense<0.000000e+00> : vector<16x128xf32>
    %23 = tpu.matmul %10, %22, %cst_15 {dimension_numbers = #tpu.dot_dimension_numbers<[1], [0], [0], [1], [0, 0, 1, 1], [], []>} : vector<16x72xbf16>, vector<72x128xbf16>, vector<16x128xf32> -> vector<16x128xf32>
    %24 = arith.addf %20, %23 : vector<16x128xf32>
    %cst_16 = arith.constant 0.000000e+00 : f32
    %25 = vector.broadcast %cst_16 : f32 to vector<16x128xf32>
    %26 = arith.maximumf %24, %25 : vector<16x128xf32>
    %27 = arith.addf %11, %26 : vector<16x128xf32>
    %cst_17 = arith.constant 0.000000e+00 : f32
    %28 = vector.broadcast %cst_17 : f32 to vector<16x128xf32>
    %c1_18 = arith.constant 1 : index
    %c0_19 = arith.constant 0 : index
    %c0_20 = arith.constant 0 : index
    %c0_21 = arith.constant 0 : index
    %29 = vector.load %arg3[%c1_18, %c0_19, %c0_20, %c0_21] : memref<3x3x72x128xbf16, #tpu.memory_space<vmem>>, vector<1x1x72x128xbf16>
    %30 = vector.shape_cast %29 : vector<1x1x72x128xbf16> to vector<72x128xbf16>
    %cst_22 = arith.constant dense<0.000000e+00> : vector<16x128xf32>
    %31 = tpu.matmul %4, %30, %cst_22 {dimension_numbers = #tpu.dot_dimension_numbers<[1], [0], [0], [1], [0, 0, 1, 1], [], []>} : vector<16x72xbf16>, vector<72x128xbf16>, vector<16x128xf32> -> vector<16x128xf32>
    %32 = arith.addf %28, %31 : vector<16x128xf32>
    %c1_23 = arith.constant 1 : index
    %c1_24 = arith.constant 1 : index
    %c0_25 = arith.constant 0 : index
    %c0_26 = arith.constant 0 : index
    %33 = vector.load %arg3[%c1_23, %c1_24, %c0_25, %c0_26] : memref<3x3x72x128xbf16, #tpu.memory_space<vmem>>, vector<1x1x72x128xbf16>
    %34 = vector.shape_cast %33 : vector<1x1x72x128xbf16> to vector<72x128xbf16>
    %cst_27 = arith.constant dense<0.000000e+00> : vector<16x128xf32>
    %35 = tpu.matmul %7, %34, %cst_27 {dimension_numbers = #tpu.dot_dimension_numbers<[1], [0], [0], [1], [0, 0, 1, 1], [], []>} : vector<16x72xbf16>, vector<72x128xbf16>, vector<16x128xf32> -> vector<16x128xf32>
    %36 = arith.addf %32, %35 : vector<16x128xf32>
    %c1_28 = arith.constant 1 : index
    %c2_29 = arith.constant 2 : index
    %c0_30 = arith.constant 0 : index
    %c0_31 = arith.constant 0 : index
    %37 = vector.load %arg3[%c1_28, %c2_29, %c0_30, %c0_31] : memref<3x3x72x128xbf16, #tpu.memory_space<vmem>>, vector<1x1x72x128xbf16>
    %38 = vector.shape_cast %37 : vector<1x1x72x128xbf16> to vector<72x128xbf16>
    %cst_32 = arith.constant dense<0.000000e+00> : vector<16x128xf32>
    %39 = tpu.matmul %10, %38, %cst_32 {dimension_numbers = #tpu.dot_dimension_numbers<[1], [0], [0], [1], [0, 0, 1, 1], [], []>} : vector<16x72xbf16>, vector<72x128xbf16>, vector<16x128xf32> -> vector<16x128xf32>
    %40 = arith.addf %36, %39 : vector<16x128xf32>
    %cst_33 = arith.constant 0.000000e+00 : f32
    %41 = vector.broadcast %cst_33 : f32 to vector<16x128xf32>
    %42 = arith.maximumf %40, %41 : vector<16x128xf32>
    %43 = arith.addf %27, %42 : vector<16x128xf32>
    %cst_34 = arith.constant 0.000000e+00 : f32
    %44 = vector.broadcast %cst_34 : f32 to vector<16x128xf32>
    %c2_35 = arith.constant 2 : index
    %c0_36 = arith.constant 0 : index
    %c0_37 = arith.constant 0 : index
    %c0_38 = arith.constant 0 : index
    %45 = vector.load %arg3[%c2_35, %c0_36, %c0_37, %c0_38] : memref<3x3x72x128xbf16, #tpu.memory_space<vmem>>, vector<1x1x72x128xbf16>
    %46 = vector.shape_cast %45 : vector<1x1x72x128xbf16> to vector<72x128xbf16>
    %cst_39 = arith.constant dense<0.000000e+00> : vector<16x128xf32>
    %47 = tpu.matmul %4, %46, %cst_39 {dimension_numbers = #tpu.dot_dimension_numbers<[1], [0], [0], [1], [0, 0, 1, 1], [], []>} : vector<16x72xbf16>, vector<72x128xbf16>, vector<16x128xf32> -> vector<16x128xf32>
    %48 = arith.addf %44, %47 : vector<16x128xf32>
    %c2_40 = arith.constant 2 : index
    %c1_41 = arith.constant 1 : index
    %c0_42 = arith.constant 0 : index
    %c0_43 = arith.constant 0 : index
    %49 = vector.load %arg3[%c2_40, %c1_41, %c0_42, %c0_43] : memref<3x3x72x128xbf16, #tpu.memory_space<vmem>>, vector<1x1x72x128xbf16>
    %50 = vector.shape_cast %49 : vector<1x1x72x128xbf16> to vector<72x128xbf16>
    %cst_44 = arith.constant dense<0.000000e+00> : vector<16x128xf32>
    %51 = tpu.matmul %7, %50, %cst_44 {dimension_numbers = #tpu.dot_dimension_numbers<[1], [0], [0], [1], [0, 0, 1, 1], [], []>} : vector<16x72xbf16>, vector<72x128xbf16>, vector<16x128xf32> -> vector<16x128xf32>
    %52 = arith.addf %48, %51 : vector<16x128xf32>
    %c2_45 = arith.constant 2 : index
    %c2_46 = arith.constant 2 : index
    %c0_47 = arith.constant 0 : index
    %c0_48 = arith.constant 0 : index
    %53 = vector.load %arg3[%c2_45, %c2_46, %c0_47, %c0_48] : memref<3x3x72x128xbf16, #tpu.memory_space<vmem>>, vector<1x1x72x128xbf16>
    %54 = vector.shape_cast %53 : vector<1x1x72x128xbf16> to vector<72x128xbf16>
    %cst_49 = arith.constant dense<0.000000e+00> : vector<16x128xf32>
    %55 = tpu.matmul %10, %54, %cst_49 {dimension_numbers = #tpu.dot_dimension_numbers<[1], [0], [0], [1], [0, 0, 1, 1], [], []>} : vector<16x72xbf16>, vector<72x128xbf16>, vector<16x128xf32> -> vector<16x128xf32>
    %56 = arith.addf %52, %55 : vector<16x128xf32>
    %cst_50 = arith.constant 0.000000e+00 : f32
    %57 = vector.broadcast %cst_50 : f32 to vector<16x128xf32>
    %58 = arith.maximumf %56, %57 : vector<16x128xf32>
    %59 = arith.addf %43, %58 : vector<16x128xf32>
    %60 = vector.shape_cast %59 : vector<16x128xf32> to vector<1x16x128xf32>
    %c0_51 = arith.constant 0 : index
    %c0_52 = arith.constant 0 : index
    %c0_53 = arith.constant 0 : index
    %61 = vector.load %arg4[%c0_51, %c0_52, %c0_53] : memref<1x16x128xf32, #tpu.memory_space<vmem>>, vector<1x16x128xf32>
    tpu.vector_store %arg4[%c0_51, %c0_52, %c0_53], %60 {strides = array<i32>} : memref<1x16x128xf32, #tpu.memory_space<vmem>>, vector<1x16x128xf32>,
    return
  }
  func.func @transform_0(%arg0: i32, %arg1: i32) -> (i32, i32, i32) {
    %c0_i32 = arith.constant 0 : i32
    %c0_i32_0 = arith.constant 0 : i32
    %c0_i32_1 = arith.constant 0 : i32
    return %arg0, %c0_i32, %c0_i32_0 : i32, i32, i32
  }
  func.func @transform_1(%arg0: i32, %arg1: i32) -> (i32, i32, i32, i32) {
    %c0_i32 = arith.constant 0 : i32
    %c0_i32_0 = arith.constant 0 : i32
    %c0_i32_1 = arith.constant 0 : i32
    %c0_i32_2 = arith.constant 0 : i32
    return %c0_i32, %c0_i32_0, %c0_i32_1, %arg1 : i32, i32, i32, i32
  }
  func.func @transform_2(%arg0: i32, %arg1: i32) -> (i32, i32, i32) {
    %c0_i32 = arith.constant 0 : i32
    %c0_i32_0 = arith.constant 0 : i32
    return %arg0, %c0_i32, %arg1 : i32, i32, i32
  }
}

module attributes {stable_mosaic.version = 11 : i64} {
  func.func @_evolvable_block_kernel(%arg0: i32, %arg1: i32, %arg2: memref<1x18x72xbf16, #tpu.memory_space<vmem>>, %arg3: memref<3x3x72x128xbf16, #tpu.memory_space<vmem>>, %arg4: memref<1x16x128xf32, #tpu.memory_space<vmem>>) attributes {dimension_semantics = [#tpu.dimension_semantics<parallel>, #tpu.dimension_semantics<parallel>], iteration_bounds = array<i64: 2, 1>, scalar_prefetch = 0 : i64, scratch_operands = 0 : i64, tpu.core_type = #tpu.core_type<tc>, window_params = [{transform_indices = @transform_0, window_bounds = array<i64: 1, 18, 72>}, {transform_indices = @transform_1, window_bounds = array<i64: 3, 3, 72, 128>}, {transform_indices = @transform_2, window_bounds = array<i64: 1, 16, 128>}]} {
    %c0 = arith.constant 0 : index
    %c0_0 = arith.constant 0 : index
    %c0_1 = arith.constant 0 : index
    %0 = vector.load %arg2[%c0, %c0_0, %c0_1] : memref<1x18x72xbf16, #tpu.memory_space<vmem>>, vector<1x18x72xbf16>
    %1 = arith.extf %0 : vector<1x18x72xbf16> to vector<1x18x72xf32>
    %2 = vector.extract_strided_slice %1 {offsets = [0, 0, 0], sizes = [1, 16, 72], strides = [1, 1, 1]} : vector<1x18x72xf32> to vector<1x16x72xf32>
    %3 = vector.shape_cast %2 : vector<1x16x72xf32> to vector<16x72xf32>
    %4 = arith.truncf %3 : vector<16x72xf32> to vector<16x72xbf16>
    %5 = vector.extract_strided_slice %1 {offsets = [0, 1, 0], sizes = [1, 16, 72], strides = [1, 1, 1]} : vector<1x18x72xf32> to vector<1x16x72xf32>
    %6 = vector.shape_cast %5 : vector<1x16x72xf32> to vector<16x72xf32>
    %7 = arith.truncf %6 : vector<16x72xf32> to vector<16x72xbf16>
    %8 = vector.extract_strided_slice %1 {offsets = [0, 2, 0], sizes = [1, 16, 72], strides = [1, 1, 1]} : vector<1x18x72xf32> to vector<1x16x72xf32>
    %9 = vector.shape_cast %8 : vector<1x16x72xf32> to vector<16x72xf32>
    %10 = arith.truncf %9 : vector<16x72xf32> to vector<16x72xbf16>
    %cst = arith.constant 0.000000e+00 : f32
    %11 = vector.broadcast %cst : f32 to vector<16x128xf32>
    %cst_2 = arith.constant 0.000000e+00 : f32
    %12 = vector.broadcast %cst_2 : f32 to vector<16x128xf32>
    %c0_3 = arith.constant 0 : index
    %c0_4 = arith.constant 0 : index
    %c0_5 = arith.constant 0 : index
    %c0_6 = arith.constant 0 : index
    %13 = vector.load %arg3[%c0_3, %c0_4, %c0_5, %c0_6] : memref<3x3x72x128xbf16, #tpu.memory_space<vmem>>, vector<1x1x72x128xbf16>
    %14 = vector.shape_cast %13 : vector<1x1x72x128xbf16> to vector<72x128xbf16>
    %cst_7 = arith.constant dense<0.000000e+00> : vector<16x128xf32>
    %15 = tpu.matmul %4, %14, %cst_7 {dimension_numbers = #tpu.dot_dimension_numbers<[1], [0], [0], [1], [0, 0, 1, 1], [], []>} : vector<16x72xbf16>, vector<72x128xbf16>, vector<16x128xf32> -> vector<16x128xf32>
    %16 = arith.addf %12, %15 : vector<16x128xf32>
    %c0_8 = arith.constant 0 : index
    %c1 = arith.constant 1 : index
    %c0_9 = arith.constant 0 : index
    %c0_10 = arith.constant 0 : index
    %17 = vector.load %arg3[%c0_8, %c1, %c0_9, %c0_10] : memref<3x3x72x128xbf16, #tpu.memory_space<vmem>>, vector<1x1x72x128xbf16>
    %18 = vector.shape_cast %17 : vector<1x1x72x128xbf16> to vector<72x128xbf16>
    %cst_11 = arith.constant dense<0.000000e+00> : vector<16x128xf32>
    %19 = tpu.matmul %7, %18, %cst_11 {dimension_numbers = #tpu.dot_dimension_numbers<[1], [0], [0], [1], [0, 0, 1, 1], [], []>} : vector<16x72xbf16>, vector<72x128xbf16>, vector<16x128xf32> -> vector<16x128xf32>
    %20 = arith.addf %16, %19 : vector<16x128xf32>
    %c0_12 = arith.constant 0 : index
    %c2 = arith.constant 2 : index
    %c0_13 = arith.constant 0 : index
    %c0_14 = arith.constant 0 : index
    %21 = vector.load %arg3[%c0_12, %c2, %c0_13, %c0_14] : memref<3x3x72x128xbf16, #tpu.memory_space<vmem>>, vector<1x1x72x128xbf16>
    %22 = vector.shape_cast %21 : vector<1x1x72x128xbf16> to vector<72x128xbf16>
    %cst_15 = arith.constant dense<0.000000e+00> : vector<16x128xf32>
    %23 = tpu.matmul %10, %22, %cst_15 {dimension_numbers = #tpu.dot_dimension_numbers<[1], [0], [0], [1], [0, 0, 1, 1], [], []>} : vector<16x72xbf16>, vector<72x128xbf16>, vector<16x128xf32> -> vector<16x128xf32>
    %24 = arith.addf %20, %23 : vector<16x128xf32>
    %cst_16 = arith.constant 0.000000e+00 : f32
    %25 = vector.broadcast %cst_16 : f32 to vector<16x128xf32>
    %26 = arith.maximumf %24, %25 : vector<16x128xf32>
    %27 = arith.addf %11, %26 : vector<16x128xf32>
    %cst_17 = arith.constant 0.000000e+00 : f32
    %28 = vector.broadcast %cst_17 : f32 to vector<16x128xf32>
    %c1_18 = arith.constant 1 : index
    %c0_19 = arith.constant 0 : index
    %c0_20 = arith.constant 0 : index
    %c0_21 = arith.constant 0 : index
    %29 = vector.load %arg3[%c1_18, %c0_19, %c0_20, %c0_21] : memref<3x3x72x128xbf16, #tpu.memory_space<vmem>>, vector<1x1x72x128xbf16>
    %30 = vector.shape_cast %29 : vector<1x1x72x128xbf16> to vector<72x128xbf16>
    %cst_22 = arith.constant dense<0.000000e+00> : vector<16x128xf32>
    %31 = tpu.matmul %4, %30, %cst_22 {dimension_numbers = #tpu.dot_dimension_numbers<[1], [0], [0], [1], [0, 0, 1, 1], [], []>} : vector<16x72xbf16>, vector<72x128xbf16>, vector<16x128xf32> -> vector<16x128xf32>
    %32 = arith.addf %28, %31 : vector<16x128xf32>
    %c1_23 = arith.constant 1 : index
    %c1_24 = arith.constant 1 : index
    %c0_25 = arith.constant 0 : index
    %c0_26 = arith.constant 0 : index
    %33 = vector.load %arg3[%c1_23, %c1_24, %c0_25, %c0_26] : memref<3x3x72x128xbf16, #tpu.memory_space<vmem>>, vector<1x1x72x128xbf16>
    %34 = vector.shape_cast %33 : vector<1x1x72x128xbf16> to vector<72x128xbf16>
    %cst_27 = arith.constant dense<0.000000e+00> : vector<16x128xf32>
    %35 = tpu.matmul %7, %34, %cst_27 {dimension_numbers = #tpu.dot_dimension_numbers<[1], [0], [0], [1], [0, 0, 1, 1], [], []>} : vector<16x72xbf16>, vector<72x128xbf16>, vector<16x128xf32> -> vector<16x128xf32>
    %36 = arith.addf %32, %35 : vector<16x128xf32>
    %c1_28 = arith.constant 1 : index
    %c2_29 = arith.constant 2 : index
    %c0_30 = arith.constant 0 : index
    %c0_31 = arith.constant 0 : index
    %37 = vector.load %arg3[%c1_28, %c2_29, %c0_30, %c0_31] : memref<3x3x72x128xbf16, #tpu.memory_space<vmem>>, vector<1x1x72x128xbf16>
    %38 = vector.shape_cast %37 : vector<1x1x72x128xbf16> to vector<72x128xbf16>
    %cst_32 = arith.constant dense<0.000000e+00> : vector<16x128xf32>
    %39 = tpu.matmul %10, %38, %cst_32 {dimension_numbers = #tpu.dot_dimension_numbers<[1], [0], [0], [1], [0, 0, 1, 1], [], []>} : vector<16x72xbf16>, vector<72x128xbf16>, vector<16x128xf32> -> vector<16x128xf32>
    %40 = arith.addf %36, %39 : vector<16x128xf32>
    %cst_33 = arith.constant 0.000000e+00 : f32
    %41 = vector.broadcast %cst_33 : f32 to vector<16x128xf32>
    %42 = arith.maximumf %40, %41 : vector<16x128xf32>
    %43 = arith.addf %27, %42 : vector<16x128xf32>
    %cst_34 = arith.constant 0.000000e+00 : f32
    %44 = vector.broadcast %cst_34 : f32 to vector<16x128xf32>
    %c2_35 = arith.constant 2 : index
    %c0_36 = arith.constant 0 : index
    %c0_37 = arith.constant 0 : index
    %c0_38 = arith.constant 0 : index
    %45 = vector.load %arg3[%c2_35, %c0_36, %c0_37, %c0_38] : memref<3x3x72x128xbf16, #tpu.memory_space<vmem>>, vector<1x1x72x128xbf16>
    %46 = vector.shape_cast %45 : vector<1x1x72x128xbf16> to vector<72x128xbf16>
    %cst_39 = arith.constant dense<0.000000e+00> : vector<16x128xf32>
    %47 = tpu.matmul %4, %46, %cst_39 {dimension_numbers = #tpu.dot_dimension_numbers<[1], [0], [0], [1], [0, 0, 1, 1], [], []>} : vector<16x72xbf16>, vector<72x128xbf16>, vector<16x128xf32> -> vector<16x128xf32>
    %48 = arith.addf %44, %47 : vector<16x128xf32>
    %c2_40 = arith.constant 2 : index
    %c1_41 = arith.constant 1 : index
    %c0_42 = arith.constant 0 : index
    %c0_43 = arith.constant 0 : index
    %49 = vector.load %arg3[%c2_40, %c1_41, %c0_42, %c0_43] : memref<3x3x72x128xbf16, #tpu.memory_space<vmem>>, vector<1x1x72x128xbf16>
    %50 = vector.shape_cast %49 : vector<1x1x72x128xbf16> to vector<72x128xbf16>
    %cst_44 = arith.constant dense<0.000000e+00> : vector<16x128xf32>
    %51 = tpu.matmul %7, %50, %cst_44 {dimension_numbers = #tpu.dot_dimension_numbers<[1], [0], [0], [1], [0, 0, 1, 1], [], []>} : vector<16x72xbf16>, vector<72x128xbf16>, vector<16x128xf32> -> vector<16x128xf32>
    %52 = arith.addf %48, %51 : vector<16x128xf32>
    %c2_45 = arith.constant 2 : index
    %c2_46 = arith.constant 2 : index
    %c0_47 = arith.constant 0 : index
    %c0_48 = arith.constant 0 : index
    %53 = vector.load %arg3[%c2_45, %c2_46, %c0_47, %c0_48] : memref<3x3x72x128xbf16, #tpu.memory_space<vmem>>, vector<1x1x72x128xbf16>
    %54 = vector.shape_cast %53 : vector<1x1x72x128xbf16> to vector<72x128xbf16>
    %cst_49 = arith.constant dense<0.000000e+00> : vector<16x128xf32>
    %55 = tpu.matmul %10, %54, %cst_49 {dimension_numbers = #tpu.dot_dimension_numbers<[1], [0], [0], [1], [0, 0, 1, 1], [], []>} : vector<16x72xbf16>, vector<72x128xbf16>, vector<16x128xf32> -> vector<16x128xf32>
    %56 = arith.addf %52, %55 : vector<16x128xf32>
    %cst_50 = arith.constant 0.000000e+00 : f32
    %57 = vector.broadcast %cst_50 : f32 to vector<16x128xf32>
    %58 = arith.maximumf %56, %57 : vector<16x128xf32>
    %59 = arith.addf %43, %58 : vector<16x128xf32>
    %60 = vector.shape_cast %59 : vector<16x128xf32> to vector<1x16x128xf32>
    %c0_51 = arith.constant 0 : index
    %c0_52 = arith.constant 0 : index
    %c0_53 = arith.constant 0 : index
    %61 = vector.load %arg4[%c0_51, %c0_52, %c0_53] : memref<1x16x128xf32, #tpu.memory_space<vmem>>, vector<1x16x128xf32>
    tpu.vector_store %arg4[%c0_51, %c0_52, %c0_53], %60 {strides = array<i32>} : memref<1x16x128xf32, #tpu.memory_space<vmem>>, vector<1x16x128xf32>,
    return
  }
  func.func @transform_0(%arg0: i32, %arg1: i32) -> (i32, i32, i32) {
    %c0_i32 = arith.constant 0 : i32
    %c0_i32_0 = arith.constant 0 : i32
    %c0_i32_1 = arith.constant 0 : i32
    return %arg0, %c0_i32, %c0_i32_0 : i32, i32, i32
  }
  func.func @transform_1(%arg0: i32, %arg1: i32) -> (i32, i32, i32, i32) {
    %c0_i32 = arith.constant 0 : i32
    %c0_i32_0 = arith.constant 0 : i32
    %c0_i32_1 = arith.constant 0 : i32
    %c0_i32_2 = arith.constant 0 : i32
    return %c0_i32, %c0_i32_0, %c0_i32_1, %arg1 : i32, i32, i32, i32
  }
  func.func @transform_2(%arg0: i32, %arg1: i32) -> (i32, i32, i32) {
    %c0_i32 = arith.constant 0 : i32
    %c0_i32_0 = arith.constant 0 : i32
    return %arg0, %c0_i32, %arg1 : i32, i32, i32
  }
}

</mosaic_0001>

<llo_original>
// kernel: tpu_custom_call.1
$region0: #{tpu_custom_call.1}
  #allocation0 [shape = 'u32[]', space=smem, size = 0x4, offset = 0x4, fixed_abs, tag = 'smem constant byte address 0x4 - core index']
  #allocation1 [shape = 'u32[144,128]{1,0:T(1,128)}', space=vmem, size = 0x12000, scoped, tag = 'internal scratch']
  %s0 = inlined_call_operand.vmem [shape: bf16[2,18,72], index: 0, kind: input, shape index: {}]
  %s1 = inlined_call_operand.hbm [shape: bf16[3,3,72,128], index: 1, kind: input, shape index: {}]
  %s2 = inlined_call_operand.hbm [shape: f32[2,16,128], index: 2, kind: output, shape index: {}]
  %s3 = sld [smem:[#allocation0]]
  $region45: #{tpu_custom_call.1} parent=0
    _
  %s5 = ssub.s32 1, %s3
  %s6 = scalar_select 0, %s5, %s3
  $region1: #{tpu_custom_call.1} parent=0
    #allocation2 [shape = 'u8[165888]{0}', space=vmem, size = 0x28800, scoped, tag = 'input window, operand 1, single buffered']
    #allocation3 [shape = 's32[2]{0}', space=sflag, size = 0x8, scoped, tag = 'scoped memory for tpu_custom_call.1']
    #allocation4 [shape = 's32[2]{0}', space=sflag, size = 0x8, scoped, tag = 'scoped memory for tpu_custom_call.1']
    #allocation5 [shape = 'u8[16384]{0}', space=vmem, size = 0x4000, scoped, tag = 'output window, operand 0']
    %7 = vsyncpa [#allocation3], 0
    %8 = vsyncpa [#allocation4], 0
    %s9 = scalar_lea.sflag [#allocation4], 1
    %10 = vsyncpa %s9, 0
    loop: start=0, step=1, limit=4
    $region2: #{tpu_custom_call.1} parent=1 // loop_pre_header
      _
    $region3: #{tpu_custom_call.1} parent=1 // loop_header
      %s12 = sphi 0, %s16
      %p13 = scmp.ge.s32.totalorder %s12, 4
      %s19 = sphi 0, %s31
      %s20 = sphi 0, %s27
      %s21 = sphi 0, %s19
      %s22 = sphi 0, %s20
      %s23 = sphi 0, %s21
      %s24 = sphi 0, %s22
      %s34 = sphi 0, %s36
      %s37 = sphi 0, %s34
      %s38 = sphi 0, %s37
      %s54 = sphi 0, %s38
      %s60 = sphi 0, %s62
      %s63 = sphi 0, %s60
      %s64 = sphi 0, %s63
      %s80 = sphi 0, %s64
      %s88 = sphi 0, %s90
      %s91 = sphi 0, %s88
      %s92 = sphi 0, %s91
      %s108 = sphi 0, %s92
    $region4: #{tpu_custom_call.1} parent=1 // loop_header_branch
      %15 = sbr.rel (%p13) target = $region8
    $region5: #{tpu_custom_call.1} parent=1 // loop_body
      %s17 = ssub.s32 %s12, 1
      %s18 = ssub.s32 %s12, 2
      %s25 = sadd.s32 1, %s20
      %p26 = scmp.ge.s32.totalorder %s25, 1
      %s27 = scalar_select %p26, 0, %s25
      %s28 = sadd.s32 1, %s19
      %s29 = scalar_select %p26, %s28, %s19
      %p30 = scmp.ge.s32.totalorder %s29, 2
      %s31 = scalar_select %p30, 0, %s29
      %s32 = ssub.s32 %s19, %s31
      %p33 = scmp.eq.s32.totalorder %s32, 0
      %s35 = sadd.s32 %s34, 1
      %s36 = scalar_select %p33, %s34, %s35
      %p39 = pneg %p33
      %p40 = scmp.eq.s32.totalorder %s12, 1
      %p41 = por %p39, %p40
      %p42 = scmp.ne.s32.totalorder %s34, %s37
      %p43 = scmp.eq.s32.totalorder %s12, 0
      %p44 = por %p42, %p43
      %p45 = scmp.ne.s32.totalorder %s34, %s37
      %p46 = scmp.eq.s32.totalorder %s17, 1
      %p47 = por %p45, %p46
      %p48 = scmp.ne.s32.totalorder %s37, %s38
      %p49 = scmp.eq.s32.totalorder %s17, 0
      %p50 = por %p48, %p49
      %p51 = scmp.ne.s32.totalorder %s37, %s38
      %p52 = scmp.eq.s32.totalorder %s18, 1
      %p53 = por %p51, %p52
      %p55 = scmp.ne.s32.totalorder %s38, %s54
      %p56 = scmp.eq.s32.totalorder %s18, 0
      %p57 = por %p55, %p56
      %s58 = ssub.s32 %s20, %s27
      %p59 = scmp.eq.s32.totalorder %s58, 0
      %s61 = sadd.s32 %s60, 1
      %s62 = scalar_select %p59, %s60, %s61
      %p65 = pneg %p59
      %p66 = scmp.eq.s32.totalorder %s12, 1
      %p67 = por %p65, %p66
      %p68 = scmp.ne.s32.totalorder %s60, %s63
      %p69 = scmp.eq.s32.totalorder %s12, 0
      %p70 = por %p68, %p69
      %p71 = scmp.ne.s32.totalorder %s60, %s63
      %p72 = scmp.eq.s32.totalorder %s17, 1
      %p73 = por %p71, %p72
      %p74 = scmp.ne.s32.totalorder %s63, %s64
      %p75 = scmp.eq.s32.totalorder %s17, 0
      %p76 = por %p74, %p75
      %p77 = scmp.ne.s32.totalorder %s63, %s64
      %p78 = scmp.eq.s32.totalorder %s18, 1
      %p79 = por %p77, %p78
      %p81 = scmp.ne.s32.totalorder %s64, %s80
      %p82 = scmp.eq.s32.totalorder %s18, 0
      %p83 = por %p81, %p82
      %s84 = ssub.s32 %s19, %s31
      %s85 = ssub.s32 %s20, %s27
      %s86 = sor.u32 %s84, %s85
      %p87 = scmp.eq.s32.totalorder %s86, 0
      %s89 = sadd.s32 %s88, 1
      %s90 = scalar_select %p87, %s88, %s89
      %p93 = pneg %p87
      %p94 = scmp.eq.s32.totalorder %s12, 1
      %p95 = por %p93, %p94
      %p96 = scmp.ne.s32.totalorder %s88, %s91
      %p97 = scmp.eq.s32.totalorder %s12, 0
      %p98 = por %p96, %p97
      %p99 = scmp.ne.s32.totalorder %s88, %s91
      %p100 = scmp.eq.s32.totalorder %s17, 1
      %p101 = por %p99, %p100
      %p102 = scmp.ne.s32.totalorder %s91, %s92
      %p103 = scmp.eq.s32.totalorder %s17, 0
      %p104 = por %p102, %p103
      %p105 = scmp.ne.s32.totalorder %s91, %s92
      %p106 = scmp.eq.s32.totalorder %s18, 1
      %p107 = por %p105, %p106
      %p109 = scmp.ne.s32.totalorder %s92, %s108
      %p110 = scmp.eq.s32.totalorder %s18, 0
      %p111 = por %p109, %p110
      %p112 = scmp.le.s32.totalorder 1, %s12
      %p113 = scmp.lt.s32.totalorder %s12, 3
      %p114 = pnand %p112, %p113
      %p115 = pneg %p114
      // Predicated region
      $region9: #{tpu_custom_call.1} parent=5 // pred_check
        _
      $region10: #{tpu_custom_call.1} parent=5 // pred_check_branch
        %117 = sbr.rel (%p114) target = $region12
      $region11: #{tpu_custom_call.1} parent=5 // pred_region
        %s118 = ssub.s32 %s12, 1
        // Predicated region
        $region13: #{tpu_custom_call.1} parent=11 // pred_check
          %p119 = pneg %p76
        $region14: #{tpu_custom_call.1} parent=11 // pred_check_branch
          %121 = sbr.rel (%p119) target = $region16
        $region15: #{tpu_custom_call.1} parent=11 // pred_region
          %s123 = ssub.s32 5184, 5184
          %124 = vsyncadd [#allocation3], %s123
          %s125 = smul.addr %s22, 64
          %s126 = scalar_lea.hbm %s1, %s125
          %s127 = sshll.u32 [#allocation2], 4
          %s128 = int_to_ptr.vmem [resolvable:$true] %s127
          %133 = dma.hbm_to_vmem [thread:$0]  %s126, 5184, %s128, [#allocation3], 64, 64, 4
        $region16: #{tpu_custom_call.1} parent=11 // pred_fallthru
          _
      $region12: #{tpu_custom_call.1} parent=5 // pred_fallthru
        _
      %p134 = scmp.lt.s32.totalorder %s12, 2
      // Predicated region
      $region17: #{tpu_custom_call.1} parent=5 // pred_check
        %p135 = pneg %p134
      $region18: #{tpu_custom_call.1} parent=5 // pred_check_branch
        %137 = sbr.rel (%p135) target = $region20
      $region19: #{tpu_custom_call.1} parent=5 // pred_region
        // Predicated region
        $region21: #{tpu_custom_call.1} parent=19 // pred_check
          %p138 = pneg %p44
        $region22: #{tpu_custom_call.1} parent=19 // pred_check_branch
          %140 = sbr.rel (%p138) target = $region24
        $region23: #{tpu_custom_call.1} parent=19 // pred_region
          %p141 = scmp.lt.s32.totalorder %s19, 1
          %s142 = scalar_select %p141, %s19, 1
          %s143 = smul.addr %s142, 3
          %s144 = smul.addr %s143, 4
          %s145 = scalar_lea.vmem %s0, %s144
        $region24: #{tpu_custom_call.1} parent=19 // pred_fallthru
          _
      $region20: #{tpu_custom_call.1} parent=5 // pred_fallthru
        _
      %p146 = scmp.le.s32.totalorder 1, %s12
      %p147 = scmp.lt.s32.totalorder %s12, 3
      %p148 = pnand %p146, %p147
      %p149 = pneg %p148
      // Predicated region
      $region25: #{tpu_custom_call.1} parent=5 // pred_check
        _
      $region26: #{tpu_custom_call.1} parent=5 // pred_check_branch
        %151 = sbr.rel (%p148) target = $region28
      $region27: #{tpu_custom_call.1} parent=5 // pred_region
        %s152 = ssub.s32 %s12, 1
        // Predicated region
        $region29: #{tpu_custom_call.1} parent=27 // pred_check
          %p153 = pneg %p76
        $region30: #{tpu_custom_call.1} parent=27 // pred_check_branch
          %155 = sbr.rel (%p153) target = $region32
        $region31: #{tpu_custom_call.1} parent=27 // pred_region
          %156 = dma.done [#allocation3], 5184
        $region32: #{tpu_custom_call.1} parent=27 // pred_fallthru
          _
        %p157 = scmp.lt.s32.totalorder %s21, 1
        %s158 = scalar_select %p157, %s21, 1
        %s159 = smul.addr %s158, 3
        %s160 = smul.addr %s159, 4
        %s161 = scalar_lea.vmem %s0, %s160
        %p162 = pneg %p50
        %p163 = pneg %p47
        %p164 = pneg %p76
        %p165 = pneg %p73
        %p166 = pneg %p104
        %p167 = pneg %p101
        %s168 = sand.u32 %s91, 1
        %s169 = scalar_lea.sflag [#allocation4], %s168
        %s170 = sand.u32 %s91, 1
        %s171 = smul.addr %s170, 16
        %s172 = scalar_lea.vmem [#allocation5], %s171
        %p173 = scmp.lt.s32.totalorder %s21, 1
        %s174 = scalar_select %p173, %s21, 1
        %s175 = smul.addr %s174, 3
        %s176 = smul.addr %s175, 4
        %s177 = scalar_lea.vmem %s0, %s176
        %v179 = vld [vmem:[%s177] sm:$0xf]
        %v180 = vld [vmem:[%s177 + $0x4] sm:$0xf]
        %v181 = vld [vmem:[%s177 + $0x8] sm:$0x1]
        %v182 = vunpack.c.l.bf16 %v179
        %v183 = vunpack.c.l.bf16 %v180
        %v184 = vunpack.c.l.bf16 %v181
        %v185 = vpack.c.bf16 %v183, %v182
        %v186 = vpack.c.bf16 %v184, %v184
        %v187 = vld [vmem:[#allocation2] sm:$0xf]
        %v188 = vld [vmem:[#allocation2 + $0x4] sm:$0xf]
        %v189 = vld [vmem:[#allocation2 + $0x8] sm:$0xf]
        %v190 = vld [vmem:[#allocation2 + $0xc] sm:$0xf]
        %v191 = vld [vmem:[#allocation2 + $0x10] sm:$0xf]
        %v192 = vld [vmem:[#allocation2 + $0x14] sm:$0xf]
        %v193 = vld [vmem:[#allocation2 + $0x18] sm:$0xf]
        %v194 = vld [vmem:[#allocation2 + $0x1c] sm:$0xf]
        %v195 = vld [vmem:[#allocation2 + $0x20] sm:$0xf]
        %s196 = scalar_lea.vmem [#allocation2], 36
        %v197 = vld [vmem:[%s196] sm:$0xf]
        %v198 = vld [vmem:[%s196 + $0x4] sm:$0xf]
        %v199 = vld [vmem:[%s196 + $0x8] sm:$0xf]
        %v200 = vld [vmem:[%s196 + $0xc] sm:$0xf]
        %v201 = vld [vmem:[%s196 + $0x10] sm:$0xf]
        %v202 = vld [vmem:[%s196 + $0x14] sm:$0xf]
        %v203 = vld [vmem:[%s196 + $0x18] sm:$0xf]
        %v204 = vld [vmem:[%s196 + $0x1c] sm:$0xf]
        %v205 = vld [vmem:[%s196 + $0x20] sm:$0xf]
        %vm206 = vsmask.f32 7424
        %v208 = vshrl.u32 %v185, 16
        %v210 = vshll.u32 %v185, 16
        %v212 = vrot.slane %v210, 1
        %v213 = vor.u32 %v208, %v212
        %v215 = vshll.u32 %v186, 16
        %v217 = vrot.slane %v215, 1
        %v218 = vsel %vm206, %v213, %v217
        %v228 = vunpack.c.l.b16 %v197
        %v229 = vunpack.c.l.b16 %v198
        %v230 = vunpack.c.l.b16 %v199
        %v231 = vunpack.c.l.b16 %v200
        %v232 = vunpack.c.l.b16 %v201
        %v233 = vunpack.c.l.b16 %v202
        %v234 = vunpack.c.l.b16 %v203
        %v235 = vunpack.c.l.b16 %v204
        %v236 = vunpack.c.l.b16 %v205
        %v237 = vpack.c.b16 %v229, %v228
        %v238 = vpack.c.b16 %v231, %v230
        %v239 = vpack.c.b16 %v233, %v232
        %v240 = vpack.c.b16 %v235, %v234
        %v241 = vpack.c.b16 %v236, %v236
        %vm246 = vcmask 588800
        %v248 = vsel %vm246, %v218, 0
        %vm250 = vcmask 1043456
        %v252 = vsel %vm250, %v241, 0
        %254 = vmatprep.subr.bf16.mxu0 0
        %255 = vmatpush1.bf16.msra.mxu0 %v237
        %256 = vmatprep.subr.bf16.mxu0 0
        %257 = vmatpush1.bf16.msra.mxu0 %v238
        %258 = vmatprep.subr.bf16.mxu0 0
        %259 = vmatpush1.bf16.msra.mxu0 %v239
        %260 = vmatprep.subr.bf16.mxu0 0
        %261 = vmatpush1.bf16.msra.mxu0 %v240
        %262 = vmatprep.subr.bf16.mxu0 0
        %263 = vmatpush1.bf16.msra.mxu0 %v252
        %264 = vmatprep.subr.bf16.mxu0 0
        %265 = vmatpush1.bf16.msra.mxu0 0
        %266 = vmatprep.subr.bf16.mxu0 0
        %267 = vmatpush1.bf16.msra.mxu0 0
        %268 = vmatprep.subr.bf16.mxu0 0
        %269 = vmatpush1.bf16.msra.mxu0 0
        %270 = vmatprep.subr.bf16.mxu0 0
        %271 = vmatpush1.bf16.msra.mxu0 0
        %272 = vmatprep.subr.bf16.mxu0 0
        %273 = vmatpush1.bf16.msra.mxu0 0
        %274 = vmatprep.subr.bf16.mxu0 0
        %275 = vmatpush1.bf16.msra.mxu0 0
        %276 = vmatprep.subr.bf16.mxu0 0
        %277 = vmatpush1.bf16.msra.mxu0 0
        %278 = vmatprep.subr.bf16.mxu0 0
        %279 = vmatpush1.bf16.msra.mxu0 0
        %280 = vmatprep.subr.bf16.mxu0 0
        %281 = vmatpush1.bf16.msra.mxu0 0
        %282 = vmatprep.subr.bf16.mxu0 0
        %283 = vmatpush1.bf16.msra.mxu0 0
        %284 = vmatprep.subr.bf16.mxu0 0
        %285 = vmatpush1.bf16.msra.mxu0 0
        %286 = vmatprep.mubr.bf16.mxu0 0
        %287 = vmatmul.mubr.bf16.gmra.mrb[0].mxu0 %v248
        %v288 = vpop.f32.mrb[0].mxu0
        %v289 = vadd.f32 0.0, %v288
        %v290 = vpop.f32.mrb[0].mxu0
        %v291 = vpop.f32.mrb[0].mxu0
        %v292 = vadd.f32 0.0, %v291
        %v293 = vpop.f32.mrb[0].mxu0
        %294 = vdwg.mxu0
        %v304 = vunpack.c.l.b16 %v187
        %v305 = vunpack.c.l.b16 %v188
        %v306 = vunpack.c.l.b16 %v189
        %v307 = vunpack.c.l.b16 %v190
        %v308 = vunpack.c.l.b16 %v191
        %v309 = vunpack.c.l.b16 %v192
        %v310 = vunpack.c.l.b16 %v193
        %v311 = vunpack.c.l.b16 %v194
        %v312 = vunpack.c.l.b16 %v195
        %v313 = vpack.c.b16 %v305, %v304
        %v314 = vpack.c.b16 %v307, %v306
        %v315 = vpack.c.b16 %v309, %v308
        %v316 = vpack.c.b16 %v311, %v310
        %v317 = vpack.c.b16 %v312, %v312
        %v322 = vsel %vm246, %v185, 0
        %v325 = vsel %vm250, %v317, 0
        %327 = vmatprep.subr.bf16.mxu0 0
        %328 = vmatpush1.bf16.msra.mxu0 %v313
        %329 = vmatprep.subr.bf16.mxu0 0
        %330 = vmatpush1.bf16.msra.mxu0 %v314
        %331 = vmatprep.subr.bf16.mxu0 0
        %332 = vmatpush1.bf16.msra.mxu0 %v315
        %333 = vmatprep.subr.bf16.mxu0 0
        %334 = vmatpush1.bf16.msra.mxu0 %v316
        %335 = vmatprep.subr.bf16.mxu0 0
        %336 = vmatpush1.bf16.msra.mxu0 %v325
        %337 = vmatprep.subr.bf16.mxu0 0
        %338 = vmatpush1.bf16.msra.mxu0 0
        %339 = vmatprep.subr.bf16.mxu0 0
        %340 = vmatpush1.bf16.msra.mxu0 0
        %341 = vmatprep.subr.bf16.mxu0 0
        %342 = vmatpush1.bf16.msra.mxu0 0
        %343 = vmatprep.subr.bf16.mxu0 0
        %344 = vmatpush1.bf16.msra.mxu0 0
        %345 = vmatprep.subr.bf16.mxu0 0
        %346 = vmatpush1.bf16.msra.mxu0 0
        %347 = vmatprep.subr.bf16.mxu0 0
        %348 = vmatpush1.bf16.msra.mxu0 0
        %349 = vmatprep.subr.bf16.mxu0 0
        %350 = vmatpush1.bf16.msra.mxu0 0
        %351 = vmatprep.subr.bf16.mxu0 0
        %352 = vmatpush1.bf16.msra.mxu0 0
        %353 = vmatprep.subr.bf16.mxu0 0
        %354 = vmatpush1.bf16.msra.mxu0 0
        %355 = vmatprep.subr.bf16.mxu0 0
        %356 = vmatpush1.bf16.msra.mxu0 0
        %357 = vmatprep.subr.bf16.mxu0 0
        %358 = vmatpush1.bf16.msra.mxu0 0
        %359 = vmatprep.mubr.bf16.mxu0 0
        %360 = vmatmul.mubr.bf16.gmra.mrb[0].mxu0 %v322
        %v361 = vpop.f32.mrb[0].mxu0
        %v362 = vadd.f32 %v289, %v361
        %v363 = vpop.f32.mrb[0].mxu0
        %v364 = vpop.f32.mrb[0].mxu0
        %v365 = vadd.f32 %v292, %v364
        %v366 = vpop.f32.mrb[0].mxu0
        %367 = vdwg.mxu0
        %s368 = scalar_lea.vmem [#allocation2], 72
        %v369 = vld [vmem:[%s368] sm:$0xf]
        %v370 = vld [vmem:[%s368 + $0x4] sm:$0xf]
        %v371 = vld [vmem:[%s368 + $0x8] sm:$0xf]
        %v372 = vld [vmem:[%s368 + $0xc] sm:$0xf]
        %v373 = vld [vmem:[%s368 + $0x10] sm:$0xf]
        %v374 = vld [vmem:[%s368 + $0x14] sm:$0xf]
        %v375 = vld [vmem:[%s368 + $0x18] sm:$0xf]
        %v376 = vld [vmem:[%s368 + $0x1c] sm:$0xf]
        %v377 = vld [vmem:[%s368 + $0x20] sm:$0xf]
        %vm380 = vcmask 1046528
        %v381 = vrot.slane %v185, 1
        %v382 = vrot.slane %v186, 1
        %v383 = vsel %vm380, %v381, %v382
        %v393 = vunpack.c.l.b16 %v369
        %v394 = vunpack.c.l.b16 %v370
        %v395 = vunpack.c.l.b16 %v371
        %v396 = vunpack.c.l.b16 %v372
        %v397 = vunpack.c.l.b16 %v373
        %v398 = vunpack.c.l.b16 %v374
        %v399 = vunpack.c.l.b16 %v375
        %v400 = vunpack.c.l.b16 %v376
        %v401 = vunpack.c.l.b16 %v377
        %v402 = vpack.c.b16 %v394, %v393
        %v403 = vpack.c.b16 %v396, %v395
        %v404 = vpack.c.b16 %v398, %v397
        %v405 = vpack.c.b16 %v400, %v399
        %v406 = vpack.c.b16 %v401, %v401
        %v412 = vsel %vm246, %v383, 0
        %v415 = vsel %vm250, %v406, 0
        %417 = vmatprep.subr.bf16.mxu0 0
        %418 = vmatpush1.bf16.msra.mxu0 %v402
        %419 = vmatprep.subr.bf16.mxu0 0
        %420 = vmatpush1.bf16.msra.mxu0 %v403
        %421 = vmatprep.subr.bf16.mxu0 0
        %422 = vmatpush1.bf16.msra.mxu0 %v404
        %423 = vmatprep.subr.bf16.mxu0 0
        %424 = vmatpush1.bf16.msra.mxu0 %v405
        %425 = vmatprep.subr.bf16.mxu0 0
        %426 = vmatpush1.bf16.msra.mxu0 %v415
        %427 = vmatprep.subr.bf16.mxu0 0
        %428 = vmatpush1.bf16.msra.mxu0 0
        %429 = vmatprep.subr.bf16.mxu0 0
        %430 = vmatpush1.bf16.msra.mxu0 0
        %431 = vmatprep.subr.bf16.mxu0 0
        %432 = vmatpush1.bf16.msra.mxu0 0
        %433 = vmatprep.subr.bf16.mxu0 0
        %434 = vmatpush1.bf16.msra.mxu0 0
        %435 = vmatprep.subr.bf16.mxu0 0
        %436 = vmatpush1.bf16.msra.mxu0 0
        %437 = vmatprep.subr.bf16.mxu0 0
        %438 = vmatpush1.bf16.msra.mxu0 0
        %439 = vmatprep.subr.bf16.mxu0 0
        %440 = vmatpush1.bf16.msra.mxu0 0
        %441 = vmatprep.subr.bf16.mxu0 0
        %442 = vmatpush1.bf16.msra.mxu0 0
        %443 = vmatprep.subr.bf16.mxu0 0
        %444 = vmatpush1.bf16.msra.mxu0 0
        %445 = vmatprep.subr.bf16.mxu0 0
        %446 = vmatpush1.bf16.msra.mxu0 0
        %447 = vmatprep.subr.bf16.mxu0 0
        %448 = vmatpush1.bf16.msra.mxu0 0
        %449 = vmatprep.mubr.bf16.mxu0 0
        %450 = vmatmul.mubr.bf16.gmra.mrb[0].mxu0 %v412
        %v451 = vpop.f32.mrb[0].mxu0
        %v452 = vadd.f32 0.0, %v451
        %v453 = vpop.f32.mrb[0].mxu0
        %v454 = vpop.f32.mrb[0].mxu0
        %v455 = vadd.f32 0.0, %v454
        %v456 = vpop.f32.mrb[0].mxu0
        %457 = vdwg.mxu0
        %v458 = vadd.f32 %v362, %v452
        %v459 = vadd.f32 %v365, %v455
        %v460 = vmax.f32 %v458, 0.0
        %v461 = vmax.f32 %v459, 0.0
        %v462 = vadd.f32 %v460, 0.0
        %v463 = vadd.f32 %v461, 0.0
        %s464 = scalar_lea.vmem [#allocation2], 108
        %v465 = vld [vmem:[%s464] sm:$0xf]
        %v466 = vld [vmem:[%s464 + $0x4] sm:$0xf]
        %v467 = vld [vmem:[%s464 + $0x8] sm:$0xf]
        %v468 = vld [vmem:[%s464 + $0xc] sm:$0xf]
        %v469 = vld [vmem:[%s464 + $0x10] sm:$0xf]
        %v470 = vld [vmem:[%s464 + $0x14] sm:$0xf]
        %v471 = vld [vmem:[%s464 + $0x18] sm:$0xf]
        %v472 = vld [vmem:[%s464 + $0x1c] sm:$0xf]
        %v473 = vld [vmem:[%s464 + $0x20] sm:$0xf]
        %s474 = scalar_lea.vmem [#allocation2], 144
        %v475 = vld [vmem:[%s474] sm:$0xf]
        %v476 = vld [vmem:[%s474 + $0x4] sm:$0xf]
        %v477 = vld [vmem:[%s474 + $0x8] sm:$0xf]
        %v478 = vld [vmem:[%s474 + $0xc] sm:$0xf]
        %v479 = vld [vmem:[%s474 + $0x10] sm:$0xf]
        %v480 = vld [vmem:[%s474 + $0x14] sm:$0xf]
        %v481 = vld [vmem:[%s474 + $0x18] sm:$0xf]
        %v482 = vld [vmem:[%s474 + $0x1c] sm:$0xf]
        %v483 = vld [vmem:[%s474 + $0x20] sm:$0xf]
        %v493 = vunpack.c.l.b16 %v475
        %v494 = vunpack.c.l.b16 %v476
        %v495 = vunpack.c.l.b16 %v477
        %v496 = vunpack.c.l.b16 %v478
        %v497 = vunpack.c.l.b16 %v479
        %v498 = vunpack.c.l.b16 %v480
        %v499 = vunpack.c.l.b16 %v481
        %v500 = vunpack.c.l.b16 %v482
        %v501 = vunpack.c.l.b16 %v483
        %v502 = vpack.c.b16 %v494, %v493
        %v503 = vpack.c.b16 %v496, %v495
        %v504 = vpack.c.b16 %v498, %v497
        %v505 = vpack.c.b16 %v500, %v499
        %v506 = vpack.c.b16 %v501, %v501
        %v512 = vsel %vm250, %v506, 0
        %514 = vmatprep.subr.bf16.mxu0 0
        %515 = vmatpush1.bf16.msra.mxu0 %v502
        %516 = vmatprep.subr.bf16.mxu0 0
        %517 = vmatpush1.bf16.msra.mxu0 %v503
        %518 = vmatprep.subr.bf16.mxu0 0
        %519 = vmatpush1.bf16.msra.mxu0 %v504
        %520 = vmatprep.subr.bf16.mxu0 0
        %521 = vmatpush1.bf16.msra.mxu0 %v505
        %522 = vmatprep.subr.bf16.mxu0 0
        %523 = vmatpush1.bf16.msra.mxu0 %v512
        %524 = vmatprep.subr.bf16.mxu0 0
        %525 = vmatpush1.bf16.msra.mxu0 0
        %526 = vmatprep.subr.bf16.mxu0 0
        %527 = vmatpush1.bf16.msra.mxu0 0
        %528 = vmatprep.subr.bf16.mxu0 0
        %529 = vmatpush1.bf16.msra.mxu0 0
        %530 = vmatprep.subr.bf16.mxu0 0
        %531 = vmatpush1.bf16.msra.mxu0 0
        %532 = vmatprep.subr.bf16.mxu0 0
        %533 = vmatpush1.bf16.msra.mxu0 0
        %534 = vmatprep.subr.bf16.mxu0 0
        %535 = vmatpush1.bf16.msra.mxu0 0
        %536 = vmatprep.subr.bf16.mxu0 0
        %537 = vmatpush1.bf16.msra.mxu0 0
        %538 = vmatprep.subr.bf16.mxu0 0
        %539 = vmatpush1.bf16.msra.mxu0 0
        %540 = vmatprep.subr.bf16.mxu0 0
        %541 = vmatpush1.bf16.msra.mxu0 0
        %542 = vmatprep.subr.bf16.mxu0 0
        %543 = vmatpush1.bf16.msra.mxu0 0
        %544 = vmatprep.subr.bf16.mxu0 0
        %545 = vmatpush1.bf16.msra.mxu0 0
        %546 = vmatprep.mubr.bf16.mxu0 0
        %547 = vmatmul.mubr.bf16.gmra.mrb[0].mxu0 %v248
        %v548 = vpop.f32.mrb[0].mxu0
        %v549 = vadd.f32 0.0, %v548
        %v550 = vpop.f32.mrb[0].mxu0
        %v551 = vpop.f32.mrb[0].mxu0
        %v552 = vadd.f32 0.0, %v551
        %v553 = vpop.f32.mrb[0].mxu0
        %554 = vdwg.mxu0
        %v564 = vunpack.c.l.b16 %v465
        %v565 = vunpack.c.l.b16 %v466
        %v566 = vunpack.c.l.b16 %v467
        %v567 = vunpack.c.l.b16 %v468
        %v568 = vunpack.c.l.b16 %v469
        %v569 = vunpack.c.l.b16 %v470
        %v570 = vunpack.c.l.b16 %v471
        %v571 = vunpack.c.l.b16 %v472
        %v572 = vunpack.c.l.b16 %v473
        %v573 = vpack.c.b16 %v565, %v564
        %v574 = vpack.c.b16 %v567, %v566
        %v575 = vpack.c.b16 %v569, %v568
        %v576 = vpack.c.b16 %v571, %v570
        %v577 = vpack.c.b16 %v572, %v572
        %v583 = vsel %vm250, %v577, 0
        %585 = vmatprep.subr.bf16.mxu0 0
        %586 = vmatpush1.bf16.msra.mxu0 %v573
        %587 = vmatprep.subr.bf16.mxu0 0
        %588 = vmatpush1.bf16.msra.mxu0 %v574
        %589 = vmatprep.subr.bf16.mxu0 0
        %590 = vmatpush1.bf16.msra.mxu0 %v575
        %591 = vmatprep.subr.bf16.mxu0 0
        %592 = vmatpush1.bf16.msra.mxu0 %v576
        %593 = vmatprep.subr.bf16.mxu0 0
        %594 = vmatpush1.bf16.msra.mxu0 %v583
        %595 = vmatprep.subr.bf16.mxu0 0
        %596 = vmatpush1.bf16.msra.mxu0 0
        %597 = vmatprep.subr.bf16.mxu0 0
        %598 = vmatpush1.bf16.msra.mxu0 0
        %599 = vmatprep.subr.bf16.mxu0 0
        %600 = vmatpush1.bf16.msra.mxu0 0
        %601 = vmatprep.subr.bf16.mxu0 0
        %602 = vmatpush1.bf16.msra.mxu0 0
        %603 = vmatprep.subr.bf16.mxu0 0
        %604 = vmatpush1.bf16.msra.mxu0 0
        %605 = vmatprep.subr.bf16.mxu0 0
        %606 = vmatpush1.bf16.msra.mxu0 0
        %607 = vmatprep.subr.bf16.mxu0 0
        %608 = vmatpush1.bf16.msra.mxu0 0
        %609 = vmatprep.subr.bf16.mxu0 0
        %610 = vmatpush1.bf16.msra.mxu0 0
        %611 = vmatprep.subr.bf16.mxu0 0
        %612 = vmatpush1.bf16.msra.mxu0 0
        %613 = vmatprep.subr.bf16.mxu0 0
        %614 = vmatpush1.bf16.msra.mxu0 0
        %615 = vmatprep.subr.bf16.mxu0 0
        %616 = vmatpush1.bf16.msra.mxu0 0
        %617 = vmatprep.mubr.bf16.mxu0 0
        %618 = vmatmul.mubr.bf16.gmra.mrb[0].mxu0 %v322
        %v619 = vpop.f32.mrb[0].mxu0
        %v620 = vadd.f32 %v549, %v619
        %v621 = vpop.f32.mrb[0].mxu0
        %v622 = vpop.f32.mrb[0].mxu0
        %v623 = vadd.f32 %v552, %v622
        %v624 = vpop.f32.mrb[0].mxu0
        %625 = vdwg.mxu0
        %s626 = scalar_lea.vmem [#allocation2], 180
        %v627 = vld [vmem:[%s626] sm:$0xf]
        %v628 = vld [vmem:[%s626 + $0x4] sm:$0xf]
        %v629 = vld [vmem:[%s626 + $0x8] sm:$0xf]
        %v630 = vld [vmem:[%s626 + $0xc] sm:$0xf]
        %v631 = vld [vmem:[%s626 + $0x10] sm:$0xf]
        %v632 = vld [vmem:[%s626 + $0x14] sm:$0xf]
        %v633 = vld [vmem:[%s626 + $0x18] sm:$0xf]
        %v634 = vld [vmem:[%s626 + $0x1c] sm:$0xf]
        %v635 = vld [vmem:[%s626 + $0x20] sm:$0xf]
        %v645 = vunpack.c.l.b16 %v627
        %v646 = vunpack.c.l.b16 %v628
        %v647 = vunpack.c.l.b16 %v629
        %v648 = vunpack.c.l.b16 %v630
        %v649 = vunpack.c.l.b16 %v631
        %v650 = vunpack.c.l.b16 %v632
        %v651 = vunpack.c.l.b16 %v633
        %v652 = vunpack.c.l.b16 %v634
        %v653 = vunpack.c.l.b16 %v635
        %v654 = vpack.c.b16 %v646, %v645
        %v655 = vpack.c.b16 %v648, %v647
        %v656 = vpack.c.b16 %v650, %v649
        %v657 = vpack.c.b16 %v652, %v651
        %v658 = vpack.c.b16 %v653, %v653
        %v664 = vsel %vm250, %v658, 0
        %666 = vmatprep.subr.bf16.mxu0 0
        %667 = vmatpush1.bf16.msra.mxu0 %v654
        %668 = vmatprep.subr.bf16.mxu0 0
        %669 = vmatpush1.bf16.msra.mxu0 %v655
        %670 = vmatprep.subr.bf16.mxu0 0
        %671 = vmatpush1.bf16.msra.mxu0 %v656
        %672 = vmatprep.subr.bf16.mxu0 0
        %673 = vmatpush1.bf16.msra.mxu0 %v657
        %674 = vmatprep.subr.bf16.mxu0 0
        %675 = vmatpush1.bf16.msra.mxu0 %v664
        %676 = vmatprep.subr.bf16.mxu0 0
        %677 = vmatpush1.bf16.msra.mxu0 0
        %678 = vmatprep.subr.bf16.mxu0 0
        %679 = vmatpush1.bf16.msra.mxu0 0
        %680 = vmatprep.subr.bf16.mxu0 0
        %681 = vmatpush1.bf16.msra.mxu0 0
        %682 = vmatprep.subr.bf16.mxu0 0
        %683 = vmatpush1.bf16.msra.mxu0 0
        %684 = vmatprep.subr.bf16.mxu0 0
        %685 = vmatpush1.bf16.msra.mxu0 0
        %686 = vmatprep.subr.bf16.mxu0 0
        %687 = vmatpush1.bf16.msra.mxu0 0
        %688 = vmatprep.subr.bf16.mxu0 0
        %689 = vmatpush1.bf16.msra.mxu0 0
        %690 = vmatprep.subr.bf16.mxu0 0
        %691 = vmatpush1.bf16.msra.mxu0 0
        %692 = vmatprep.subr.bf16.mxu0 0
        %693 = vmatpush1.bf16.msra.mxu0 0
        %694 = vmatprep.subr.bf16.mxu0 0
        %695 = vmatpush1.bf16.msra.mxu0 0
        %696 = vmatprep.subr.bf16.mxu0 0
        %697 = vmatpush1.bf16.msra.mxu0 0
        %698 = vmatprep.mubr.bf16.mxu0 0
        %699 = vmatmul.mubr.bf16.gmra.mrb[0].mxu0 %v412
        %v700 = vpop.f32.mrb[0].mxu0
        %v701 = vadd.f32 0.0, %v700
        %v702 = vpop.f32.mrb[0].mxu0
        %v703 = vpop.f32.mrb[0].mxu0
        %v704 = vadd.f32 0.0, %v703
        %v705 = vpop.f32.mrb[0].mxu0
        %706 = vdwg.mxu0
        %v707 = vadd.f32 %v620, %v701
        %v708 = vadd.f32 %v623, %v704
        %v709 = vmax.f32 %v707, 0.0
        %v710 = vmax.f32 %v708, 0.0
        %v711 = vadd.f32 %v462, %v709
        %v712 = vadd.f32 %v463, %v710
        %s713 = scalar_lea.vmem [#allocation2], 216
        %v714 = vld [vmem:[%s713] sm:$0xf]
        %v715 = vld [vmem:[%s713 + $0x4] sm:$0xf]
        %v716 = vld [vmem:[%s713 + $0x8] sm:$0xf]
        %v717 = vld [vmem:[%s713 + $0xc] sm:$0xf]
        %v718 = vld [vmem:[%s713 + $0x10] sm:$0xf]
        %v719 = vld [vmem:[%s713 + $0x14] sm:$0xf]
        %v720 = vld [vmem:[%s713 + $0x18] sm:$0xf]
        %v721 = vld [vmem:[%s713 + $0x1c] sm:$0xf]
        %v722 = vld [vmem:[%s713 + $0x20] sm:$0xf]
        %s723 = scalar_lea.vmem [#allocation2], 252
        %v724 = vld [vmem:[%s723] sm:$0xf]
        %v725 = vld [vmem:[%s723 + $0x4] sm:$0xf]
        %v726 = vld [vmem:[%s723 + $0x8] sm:$0xf]
        %v727 = vld [vmem:[%s723 + $0xc] sm:$0xf]
        %v728 = vld [vmem:[%s723 + $0x10] sm:$0xf]
        %v729 = vld [vmem:[%s723 + $0x14] sm:$0xf]
        %v730 = vld [vmem:[%s723 + $0x18] sm:$0xf]
        %v731 = vld [vmem:[%s723 + $0x1c] sm:$0xf]
        %v732 = vld [vmem:[%s723 + $0x20] sm:$0xf]
        %v742 = vunpack.c.l.b16 %v724
        %v743 = vunpack.c.l.b16 %v725
        %v744 = vunpack.c.l.b16 %v726
        %v745 = vunpack.c.l.b16 %v727
        %v746 = vunpack.c.l.b16 %v728
        %v747 = vunpack.c.l.b16 %v729
        %v748 = vunpack.c.l.b16 %v730
        %v749 = vunpack.c.l.b16 %v731
        %v750 = vunpack.c.l.b16 %v732
        %v751 = vpack.c.b16 %v743, %v742
        %v752 = vpack.c.b16 %v745, %v744
        %v753 = vpack.c.b16 %v747, %v746
        %v754 = vpack.c.b16 %v749, %v748
        %v755 = vpack.c.b16 %v750, %v750
        %v761 = vsel %vm250, %v755, 0
        %763 = vmatprep.subr.bf16.mxu0 0
        %764 = vmatpush1.bf16.msra.mxu0 %v751
        %765 = vmatprep.subr.bf16.mxu0 0
        %766 = vmatpush1.bf16.msra.mxu0 %v752
        %767 = vmatprep.subr.bf16.mxu0 0
        %768 = vmatpush1.bf16.msra.mxu0 %v753
        %769 = vmatprep.subr.bf16.mxu0 0
        %770 = vmatpush1.bf16.msra.mxu0 %v754
        %771 = vmatprep.subr.bf16.mxu0 0
        %772 = vmatpush1.bf16.msra.mxu0 %v761
        %773 = vmatprep.subr.bf16.mxu0 0
        %774 = vmatpush1.bf16.msra.mxu0 0
        %775 = vmatprep.subr.bf16.mxu0 0
        %776 = vmatpush1.bf16.msra.mxu0 0
        %777 = vmatprep.subr.bf16.mxu0 0
        %778 = vmatpush1.bf16.msra.mxu0 0
        %779 = vmatprep.subr.bf16.mxu0 0
        %780 = vmatpush1.bf16.msra.mxu0 0
        %781 = vmatprep.subr.bf16.mxu0 0
        %782 = vmatpush1.bf16.msra.mxu0 0
        %783 = vmatprep.subr.bf16.mxu0 0
        %784 = vmatpush1.bf16.msra.mxu0 0
        %785 = vmatprep.subr.bf16.mxu0 0
        %786 = vmatpush1.bf16.msra.mxu0 0
        %787 = vmatprep.subr.bf16.mxu0 0
        %788 = vmatpush1.bf16.msra.mxu0 0
        %789 = vmatprep.subr.bf16.mxu0 0
        %790 = vmatpush1.bf16.msra.mxu0 0
        %791 = vmatprep.subr.bf16.mxu0 0
        %792 = vmatpush1.bf16.msra.mxu0 0
        %793 = vmatprep.subr.bf16.mxu0 0
        %794 = vmatpush1.bf16.msra.mxu0 0
        %795 = vmatprep.mubr.bf16.mxu0 0
        %796 = vmatmul.mubr.bf16.gmra.mrb[0].mxu0 %v248
        %v797 = vpop.f32.mrb[0].mxu0
        %v798 = vadd.f32 0.0, %v797
        %v799 = vpop.f32.mrb[0].mxu0
        %v800 = vpop.f32.mrb[0].mxu0
        %v801 = vadd.f32 0.0, %v800
        %v802 = vpop.f32.mrb[0].mxu0
        %803 = vdwg.mxu0
        %v813 = vunpack.c.l.b16 %v714
        %v814 = vunpack.c.l.b16 %v715
        %v815 = vunpack.c.l.b16 %v716
        %v816 = vunpack.c.l.b16 %v717
        %v817 = vunpack.c.l.b16 %v718
        %v818 = vunpack.c.l.b16 %v719
        %v819 = vunpack.c.l.b16 %v720
        %v820 = vunpack.c.l.b16 %v721
        %v821 = vunpack.c.l.b16 %v722
        %v822 = vpack.c.b16 %v814, %v813
        %v823 = vpack.c.b16 %v816, %v815
        %v824 = vpack.c.b16 %v818, %v817
        %v825 = vpack.c.b16 %v820, %v819
        %v826 = vpack.c.b16 %v821, %v821
        %v832 = vsel %vm250, %v826, 0
        %834 = vmatprep.subr.bf16.mxu0 0
        %835 = vmatpush1.bf16.msra.mxu0 %v822
        %836 = vmatprep.subr.bf16.mxu0 0
        %837 = vmatpush1.bf16.msra.mxu0 %v823
        %838 = vmatprep.subr.bf16.mxu0 0
        %839 = vmatpush1.bf16.msra.mxu0 %v824
        %840 = vmatprep.subr.bf16.mxu0 0
        %841 = vmatpush1.bf16.msra.mxu0 %v825
        %842 = vmatprep.subr.bf16.mxu0 0
        %843 = vmatpush1.bf16.msra.mxu0 %v832
        %844 = vmatprep.subr.bf16.mxu0 0
        %845 = vmatpush1.bf16.msra.mxu0 0
        %846 = vmatprep.subr.bf16.mxu0 0
        %847 = vmatpush1.bf16.msra.mxu0 0
        %848 = vmatprep.subr.bf16.mxu0 0
        %849 = vmatpush1.bf16.msra.mxu0 0
        %850 = vmatprep.subr.bf16.mxu0 0
        %851 = vmatpush1.bf16.msra.mxu0 0
        %852 = vmatprep.subr.bf16.mxu0 0
        %853 = vmatpush1.bf16.msra.mxu0 0
        %854 = vmatprep.subr.bf16.mxu0 0
        %855 = vmatpush1.bf16.msra.mxu0 0
        %856 = vmatprep.subr.bf16.mxu0 0
        %857 = vmatpush1.bf16.msra.mxu0 0
        %858 = vmatprep.subr.bf16.mxu0 0
        %859 = vmatpush1.bf16.msra.mxu0 0
        %860 = vmatprep.subr.bf16.mxu0 0
        %861 = vmatpush1.bf16.msra.mxu0 0
        %862 = vmatprep.subr.bf16.mxu0 0
        %863 = vmatpush1.bf16.msra.mxu0 0
        %864 = vmatprep.subr.bf16.mxu0 0
        %865 = vmatpush1.bf16.msra.mxu0 0
        %866 = vmatprep.mubr.bf16.mxu0 0
        %867 = vmatmul.mubr.bf16.gmra.mrb[0].mxu0 %v322
        %v868 = vpop.f32.mrb[0].mxu0
        %v869 = vadd.f32 %v798, %v868
        %v870 = vpop.f32.mrb[0].mxu0
        %v871 = vpop.f32.mrb[0].mxu0
        %v872 = vadd.f32 %v801, %v871
        %v873 = vpop.f32.mrb[0].mxu0
        %874 = vdwg.mxu0
        %s875 = scalar_lea.vmem [#allocation2], 288
        %v876 = vld [vmem:[%s875] sm:$0xf]
        %v877 = vld [vmem:[%s875 + $0x4] sm:$0xf]
        %v878 = vld [vmem:[%s875 + $0x8] sm:$0xf]
        %v879 = vld [vmem:[%s875 + $0xc] sm:$0xf]
        %v880 = vld [vmem:[%s875 + $0x10] sm:$0xf]
        %v881 = vld [vmem:[%s875 + $0x14] sm:$0xf]
        %v882 = vld [vmem:[%s875 + $0x18] sm:$0xf]
        %v883 = vld [vmem:[%s875 + $0x1c] sm:$0xf]
        %v884 = vld [vmem:[%s875 + $0x20] sm:$0xf]
        %v894 = vunpack.c.l.b16 %v876
        %v895 = vunpack.c.l.b16 %v877
        %v896 = vunpack.c.l.b16 %v878
        %v897 = vunpack.c.l.b16 %v879
        %v898 = vunpack.c.l.b16 %v880
        %v899 = vunpack.c.l.b16 %v881
        %v900 = vunpack.c.l.b16 %v882
        %v901 = vunpack.c.l.b16 %v883
        %v902 = vunpack.c.l.b16 %v884
        %v903 = vpack.c.b16 %v895, %v894
        %v904 = vpack.c.b16 %v897, %v896
        %v905 = vpack.c.b16 %v899, %v898
        %v906 = vpack.c.b16 %v901, %v900
        %v907 = vpack.c.b16 %v902, %v902
        %v913 = vsel %vm250, %v907, 0
        %915 = vmatprep.subr.bf16.mxu0 0
        %916 = vmatpush1.bf16.msra.mxu0 %v903
        %917 = vmatprep.subr.bf16.mxu0 0
        %918 = vmatpush1.bf16.msra.mxu0 %v904
        %919 = vmatprep.subr.bf16.mxu0 0
        %920 = vmatpush1.bf16.msra.mxu0 %v905
        %921 = vmatprep.subr.bf16.mxu0 0
        %922 = vmatpush1.bf16.msra.mxu0 %v906
        %923 = vmatprep.subr.bf16.mxu0 0
        %924 = vmatpush1.bf16.msra.mxu0 %v913
        %925 = vmatprep.subr.bf16.mxu0 0
        %926 = vmatpush1.bf16.msra.mxu0 0
        %927 = vmatprep.subr.bf16.mxu0 0
        %928 = vmatpush1.bf16.msra.mxu0 0
        %929 = vmatprep.subr.bf16.mxu0 0
        %930 = vmatpush1.bf16.msra.mxu0 0
        %931 = vmatprep.subr.bf16.mxu0 0
        %932 = vmatpush1.bf16.msra.mxu0 0
        %933 = vmatprep.subr.bf16.mxu0 0
        %934 = vmatpush1.bf16.msra.mxu0 0
        %935 = vmatprep.subr.bf16.mxu0 0
        %936 = vmatpush1.bf16.msra.mxu0 0
        %937 = vmatprep.subr.bf16.mxu0 0
        %938 = vmatpush1.bf16.msra.mxu0 0
        %939 = vmatprep.subr.bf16.mxu0 0
        %940 = vmatpush1.bf16.msra.mxu0 0
        %941 = vmatprep.subr.bf16.mxu0 0
        %942 = vmatpush1.bf16.msra.mxu0 0
        %943 = vmatprep.subr.bf16.mxu0 0
        %944 = vmatpush1.bf16.msra.mxu0 0
        %945 = vmatprep.subr.bf16.mxu0 0
        %946 = vmatpush1.bf16.msra.mxu0 0
        %947 = vmatprep.mubr.bf16.mxu0 0
        %948 = vmatmul.mubr.bf16.gmra.mrb[0].mxu0 %v412
        %v949 = vpop.f32.mrb[0].mxu0
        %v950 = vadd.f32 0.0, %v949
        %v951 = vpop.f32.mrb[0].mxu0
        %v952 = vpop.f32.mrb[0].mxu0
        %v953 = vadd.f32 0.0, %v952
        %v954 = vpop.f32.mrb[0].mxu0
        %955 = vdwg.mxu0
        %v956 = vadd.f32 %v869, %v950
        %v957 = vadd.f32 %v872, %v953
        %v958 = vmax.f32 %v956, 0.0
        %v959 = vmax.f32 %v957, 0.0
        %v960 = vadd.f32 %v711, %v958
        %v961 = vadd.f32 %v712, %v959
        %962 = vst [vmem:[%s172] sm:$0xff] %v960
        %963 = vst [vmem:[%s172 + $0x8] sm:$0xff] %v961
        %s964 = sand.u32 %s91, 1
        %s965 = scalar_lea.sflag [#allocation4], %s964
        %s966 = sand.u32 %s91, 1
        %s967 = smul.addr %s966, 16
        %s968 = scalar_lea.vmem [#allocation5], %s967
        // Predicated region
        $region33: #{tpu_custom_call.1} parent=27 // pred_check
          %p969 = pneg %p101
        $region34: #{tpu_custom_call.1} parent=27 // pred_check_branch
          %971 = sbr.rel (%p969) target = $region36
        $region35: #{tpu_custom_call.1} parent=27 // pred_region
          %s973 = ssub.s32 256, 256
          %974 = vsyncadd %s965, %s973
          %s975 = smul.addr %s21, 2
          %s976 = sadd.s32 %s22, %s975
          %s977 = smul.addr %s976, 128
          %s978 = scalar_lea.hbm %s2, %s977
          %s979 = sshll.u32 %s968, 4
          %s980 = int_to_ptr.vmem [resolvable:$true] %s979
          %985 = dma.vmem_to_hbm [thread:$0]  %s980, 256, %s978, %s965, 128, 128, 8
        $region36: #{tpu_custom_call.1} parent=27 // pred_fallthru
          _
      $region28: #{tpu_custom_call.1} parent=5 // pred_fallthru
        _
      %p986 = scmp.le.s32.totalorder 2, %s12
      // Predicated region
      $region37: #{tpu_custom_call.1} parent=5 // pred_check
        %p987 = pneg %p986
      $region38: #{tpu_custom_call.1} parent=5 // pred_check_branch
        %989 = sbr.rel (%p987) target = $region40
      $region39: #{tpu_custom_call.1} parent=5 // pred_region
        %s990 = ssub.s32 %s12, 2
        // Predicated region
        $region41: #{tpu_custom_call.1} parent=39 // pred_check
          %p991 = pneg %p107
        $region42: #{tpu_custom_call.1} parent=39 // pred_check_branch
          %993 = sbr.rel (%p991) target = $region44
        $region43: #{tpu_custom_call.1} parent=39 // pred_region
          %s994 = sand.u32 %s92, 1
          %s995 = scalar_lea.sflag [#allocation4], %s994
          %s996 = sand.u32 %s92, 1
          %s997 = smul.addr %s996, 16
          %s998 = scalar_lea.vmem [#allocation5], %s997
          %999 = dma.done %s995, 256
        $region44: #{tpu_custom_call.1} parent=39 // pred_fallthru
          _
      $region40: #{tpu_custom_call.1} parent=5 // pred_fallthru
        _
    $region6: #{tpu_custom_call.1} parent=1 // loop_footer
      %s16 = sadd.s32 1, %s12
    $region7: #{tpu_custom_call.1} parent=1 // loop_footer_branch
      %11 = sbr.rel target = $region3
    $region8: #{tpu_custom_call.1} parent=1 // loop_exit
      _
    %1000 = vsyncpa [#allocation3], 1
    %s1001 = scalar_lea.sflag [#allocation3], 1
    %1002 = vsyncpa %s1001, 1
    %1003 = vsyncpa [#allocation4], 1
    %s1004 = scalar_lea.sflag [#allocation4], 1
    %1005 = vsyncpa %s1004, 1

// kernel: tpu_custom_call.1
$region0: #{tpu_custom_call.1}
  #allocation0 [shape = 'u32[]', space=smem, size = 0x4, offset = 0x4, fixed_abs, tag = 'smem constant byte address 0x4 - core index']
  #allocation1 [shape = 'u32[144,128]{1,0:T(1,128)}', space=vmem, size = 0x12000, scoped, tag = 'internal scratch']
  %s0 = inlined_call_operand.vmem [shape: bf16[2,18,72], index: 0, kind: input, shape index: {}]
  %s1 = inlined_call_operand.hbm [shape: bf16[3,3,72,128], index: 1, kind: input, shape index: {}]
  %s2 = inlined_call_operand.hbm [shape: f32[2,16,128], index: 2, kind: output, shape index: {}]
  %s3 = sld [smem:[#allocation0]]
  $region45: #{tpu_custom_call.1} parent=0
    _
  %s5 = ssub.s32 1, %s3
  %s6 = scalar_select 0, %s5, %s3
  $region1: #{tpu_custom_call.1} parent=0
    #allocation2 [shape = 'u8[165888]{0}', space=vmem, size = 0x28800, scoped, tag = 'input window, operand 1, single buffered']
    #allocation3 [shape = 's32[2]{0}', space=sflag, size = 0x8, scoped, tag = 'scoped memory for tpu_custom_call.1']
    #allocation4 [shape = 's32[2]{0}', space=sflag, size = 0x8, scoped, tag = 'scoped memory for tpu_custom_call.1']
    #allocation5 [shape = 'u8[16384]{0}', space=vmem, size = 0x4000, scoped, tag = 'output window, operand 0']
    %7 = vsyncpa [#allocation3], 0
    %8 = vsyncpa [#allocation4], 0
    %s9 = scalar_lea.sflag [#allocation4], 1
    %10 = vsyncpa %s9, 0
    loop: start=0, step=1, limit=4
    $region2: #{tpu_custom_call.1} parent=1 // loop_pre_header
      _
    $region3: #{tpu_custom_call.1} parent=1 // loop_header
      %s12 = sphi 0, %s16
      %p13 = scmp.ge.s32.totalorder %s12, 4
      %s19 = sphi 0, %s31
      %s20 = sphi 0, %s27
      %s21 = sphi 0, %s19
      %s22 = sphi 0, %s20
      %s23 = sphi 0, %s21
      %s24 = sphi 0, %s22
      %s34 = sphi 0, %s36
      %s37 = sphi 0, %s34
      %s38 = sphi 0, %s37
      %s54 = sphi 0, %s38
      %s60 = sphi 0, %s62
      %s63 = sphi 0, %s60
      %s64 = sphi 0, %s63
      %s80 = sphi 0, %s64
      %s88 = sphi 0, %s90
      %s91 = sphi 0, %s88
      %s92 = sphi 0, %s91
      %s108 = sphi 0, %s92
    $region4: #{tpu_custom_call.1} parent=1 // loop_header_branch
      %15 = sbr.rel (%p13) target = $region8
    $region5: #{tpu_custom_call.1} parent=1 // loop_body
      %s17 = ssub.s32 %s12, 1
      %s18 = ssub.s32 %s12, 2
      %s25 = sadd.s32 1, %s20
      %p26 = scmp.ge.s32.totalorder %s25, 1
      %s27 = scalar_select %p26, 0, %s25
      %s28 = sadd.s32 1, %s19
      %s29 = scalar_select %p26, %s28, %s19
      %p30 = scmp.ge.s32.totalorder %s29, 2
      %s31 = scalar_select %p30, 0, %s29
      %s32 = ssub.s32 %s19, %s31
      %p33 = scmp.eq.s32.totalorder %s32, 0
      %s35 = sadd.s32 %s34, 1
      %s36 = scalar_select %p33, %s34, %s35
      %p39 = pneg %p33
      %p40 = scmp.eq.s32.totalorder %s12, 1
      %p41 = por %p39, %p40
      %p42 = scmp.ne.s32.totalorder %s34, %s37
      %p43 = scmp.eq.s32.totalorder %s12, 0
      %p44 = por %p42, %p43
      %p45 = scmp.ne.s32.totalorder %s34, %s37
      %p46 = scmp.eq.s32.totalorder %s17, 1
      %p47 = por %p45, %p46
      %p48 = scmp.ne.s32.totalorder %s37, %s38
      %p49 = scmp.eq.s32.totalorder %s17, 0
      %p50 = por %p48, %p49
      %p51 = scmp.ne.s32.totalorder %s37, %s38
      %p52 = scmp.eq.s32.totalorder %s18, 1
      %p53 = por %p51, %p52
      %p55 = scmp.ne.s32.totalorder %s38, %s54
      %p56 = scmp.eq.s32.totalorder %s18, 0
      %p57 = por %p55, %p56
      %s58 = ssub.s32 %s20, %s27
      %p59 = scmp.eq.s32.totalorder %s58, 0
      %s61 = sadd.s32 %s60, 1
      %s62 = scalar_select %p59, %s60, %s61
      %p65 = pneg %p59
      %p66 = scmp.eq.s32.totalorder %s12, 1
      %p67 = por %p65, %p66
      %p68 = scmp.ne.s32.totalorder %s60, %s63
      %p69 = scmp.eq.s32.totalorder %s12, 0
      %p70 = por %p68, %p69
      %p71 = scmp.ne.s32.totalorder %s60, %s63
      %p72 = scmp.eq.s32.totalorder %s17, 1
      %p73 = por %p71, %p72
      %p74 = scmp.ne.s32.totalorder %s63, %s64
      %p75 = scmp.eq.s32.totalorder %s17, 0
      %p76 = por %p74, %p75
      %p77 = scmp.ne.s32.totalorder %s63, %s64
      %p78 = scmp.eq.s32.totalorder %s18, 1
      %p79 = por %p77, %p78
      %p81 = scmp.ne.s32.totalorder %s64, %s80
      %p82 = scmp.eq.s32.totalorder %s18, 0
      %p83 = por %p81, %p82
      %s84 = ssub.s32 %s19, %s31
      %s85 = ssub.s32 %s20, %s27
      %s86 = sor.u32 %s84, %s85
      %p87 = scmp.eq.s32.totalorder %s86, 0
      %s89 = sadd.s32 %s88, 1
      %s90 = scalar_select %p87, %s88, %s89
      %p93 = pneg %p87
      %p94 = scmp.eq.s32.totalorder %s12, 1
      %p95 = por %p93, %p94
      %p96 = scmp.ne.s32.totalorder %s88, %s91
      %p97 = scmp.eq.s32.totalorder %s12, 0
      %p98 = por %p96, %p97
      %p99 = scmp.ne.s32.totalorder %s88, %s91
      %p100 = scmp.eq.s32.totalorder %s17, 1
      %p101 = por %p99, %p100
      %p102 = scmp.ne.s32.totalorder %s91, %s92
      %p103 = scmp.eq.s32.totalorder %s17, 0
      %p104 = por %p102, %p103
      %p105 = scmp.ne.s32.totalorder %s91, %s92
      %p106 = scmp.eq.s32.totalorder %s18, 1
      %p107 = por %p105, %p106
      %p109 = scmp.ne.s32.totalorder %s92, %s108
      %p110 = scmp.eq.s32.totalorder %s18, 0
      %p111 = por %p109, %p110
      %p112 = scmp.le.s32.totalorder 1, %s12
      %p113 = scmp.lt.s32.totalorder %s12, 3
      %p114 = pnand %p112, %p113
      %p115 = pneg %p114
      // Predicated region
      $region9: #{tpu_custom_call.1} parent=5 // pred_check
        _
      $region10: #{tpu_custom_call.1} parent=5 // pred_check_branch
        %117 = sbr.rel (%p114) target = $region12
      $region11: #{tpu_custom_call.1} parent=5 // pred_region
        %s118 = ssub.s32 %s12, 1
        // Predicated region
        $region13: #{tpu_custom_call.1} parent=11 // pred_check
          %p119 = pneg %p76
        $region14: #{tpu_custom_call.1} parent=11 // pred_check_branch
          %121 = sbr.rel (%p119) target = $region16
        $region15: #{tpu_custom_call.1} parent=11 // pred_region
          %s123 = ssub.s32 5184, 5184
          %124 = vsyncadd [#allocation3], %s123
          %s125 = smul.addr %s22, 64
          %s126 = scalar_lea.hbm %s1, %s125
          %s127 = sshll.u32 [#allocation2], 4
          %s128 = int_to_ptr.vmem [resolvable:$true] %s127
          %133 = dma.hbm_to_vmem [thread:$0]  %s126, 5184, %s128, [#allocation3], 64, 64, 4
        $region16: #{tpu_custom_call.1} parent=11 // pred_fallthru
          _
      $region12: #{tpu_custom_call.1} parent=5 // pred_fallthru
        _
      %p134 = scmp.lt.s32.totalorder %s12, 2
      // Predicated region
      $region17: #{tpu_custom_call.1} parent=5 // pred_check
        %p135 = pneg %p134
      $region18: #{tpu_custom_call.1} parent=5 // pred_check_branch
        %137 = sbr.rel (%p135) target = $region20
      $region19: #{tpu_custom_call.1} parent=5 // pred_region
        // Predicated region
        $region21: #{tpu_custom_call.1} parent=19 // pred_check
          %p138 = pneg %p44
        $region22: #{tpu_custom_call.1} parent=19 // pred_check_branch
          %140 = sbr.rel (%p138) target = $region24
        $region23: #{tpu_custom_call.1} parent=19 // pred_region
          %p141 = scmp.lt.s32.totalorder %s19, 1
          %s142 = scalar_select %p141, %s19, 1
          %s143 = smul.addr %s142, 3
          %s144 = smul.addr %s143, 4
          %s145 = scalar_lea.vmem %s0, %s144
        $region24: #{tpu_custom_call.1} parent=19 // pred_fallthru
          _
      $region20: #{tpu_custom_call.1} parent=5 // pred_fallthru
        _
      %p146 = scmp.le.s32.totalorder 1, %s12
      %p147 = scmp.lt.s32.totalorder %s12, 3
      %p148 = pnand %p146, %p147
      %p149 = pneg %p148
      // Predicated region
      $region25: #{tpu_custom_call.1} parent=5 // pred_check
        _
      $region26: #{tpu_custom_call.1} parent=5 // pred_check_branch
        %151 = sbr.rel (%p148) target = $region28
      $region27: #{tpu_custom_call.1} parent=5 // pred_region
        %s152 = ssub.s32 %s12, 1
        // Predicated region
        $region29: #{tpu_custom_call.1} parent=27 // pred_check
          %p153 = pneg %p76
        $region30: #{tpu_custom_call.1} parent=27 // pred_check_branch
          %155 = sbr.rel (%p153) target = $region32
        $region31: #{tpu_custom_call.1} parent=27 // pred_region
          %156 = dma.done [#allocation3], 5184
        $region32: #{tpu_custom_call.1} parent=27 // pred_fallthru
          _
        %p157 = scmp.lt.s32.totalorder %s21, 1
        %s158 = scalar_select %p157, %s21, 1
        %s159 = smul.addr %s158, 3
        %s160 = smul.addr %s159, 4
        %s161 = scalar_lea.vmem %s0, %s160
        %p162 = pneg %p50
        %p163 = pneg %p47
        %p164 = pneg %p76
        %p165 = pneg %p73
        %p166 = pneg %p104
        %p167 = pneg %p101
        %s168 = sand.u32 %s91, 1
        %s169 = scalar_lea.sflag [#allocation4], %s168
        %s170 = sand.u32 %s91, 1
        %s171 = smul.addr %s170, 16
        %s172 = scalar_lea.vmem [#allocation5], %s171
        %p173 = scmp.lt.s32.totalorder %s21, 1
        %s174 = scalar_select %p173, %s21, 1
        %s175 = smul.addr %s174, 3
        %s176 = smul.addr %s175, 4
        %s177 = scalar_lea.vmem %s0, %s176
        %v179 = vld [vmem:[%s177] sm:$0xf]
        %v180 = vld [vmem:[%s177 + $0x4] sm:$0xf]
        %v181 = vld [vmem:[%s177 + $0x8] sm:$0x1]
        %v182 = vunpack.c.l.bf16 %v179
        %v183 = vunpack.c.l.bf16 %v180
        %v184 = vunpack.c.l.bf16 %v181
        %v185 = vpack.c.bf16 %v183, %v182
        %v186 = vpack.c.bf16 %v184, %v184
        %v187 = vld [vmem:[#allocation2] sm:$0xf]
        %v188 = vld [vmem:[#allocation2 + $0x4] sm:$0xf]
        %v189 = vld [vmem:[#allocation2 + $0x8] sm:$0xf]
        %v190 = vld [vmem:[#allocation2 + $0xc] sm:$0xf]
        %v191 = vld [vmem:[#allocation2 + $0x10] sm:$0xf]
        %v192 = vld [vmem:[#allocation2 + $0x14] sm:$0xf]
        %v193 = vld [vmem:[#allocation2 + $0x18] sm:$0xf]
        %v194 = vld [vmem:[#allocation2 + $0x1c] sm:$0xf]
        %v195 = vld [vmem:[#allocation2 + $0x20] sm:$0xf]
        %s196 = scalar_lea.vmem [#allocation2], 36
        %v197 = vld [vmem:[%s196] sm:$0xf]
        %v198 = vld [vmem:[%s196 + $0x4] sm:$0xf]
        %v199 = vld [vmem:[%s196 + $0x8] sm:$0xf]
        %v200 = vld [vmem:[%s196 + $0xc] sm:$0xf]
        %v201 = vld [vmem:[%s196 + $0x10] sm:$0xf]
        %v202 = vld [vmem:[%s196 + $0x14] sm:$0xf]
        %v203 = vld [vmem:[%s196 + $0x18] sm:$0xf]
        %v204 = vld [vmem:[%s196 + $0x1c] sm:$0xf]
        %v205 = vld [vmem:[%s196 + $0x20] sm:$0xf]
        %vm206 = vsmask.f32 7424
        %v208 = vshrl.u32 %v185, 16
        %v210 = vshll.u32 %v185, 16
        %v212 = vrot.slane %v210, 1
        %v213 = vor.u32 %v208, %v212
        %v215 = vshll.u32 %v186, 16
        %v217 = vrot.slane %v215, 1
        %v218 = vsel %vm206, %v213, %v217
        %v228 = vunpack.c.l.b16 %v197
        %v229 = vunpack.c.l.b16 %v198
        %v230 = vunpack.c.l.b16 %v199
        %v231 = vunpack.c.l.b16 %v200
        %v232 = vunpack.c.l.b16 %v201
        %v233 = vunpack.c.l.b16 %v202
        %v234 = vunpack.c.l.b16 %v203
        %v235 = vunpack.c.l.b16 %v204
        %v236 = vunpack.c.l.b16 %v205
        %v237 = vpack.c.b16 %v229, %v228
        %v238 = vpack.c.b16 %v231, %v230
        %v239 = vpack.c.b16 %v233, %v232
        %v240 = vpack.c.b16 %v235, %v234
        %v241 = vpack.c.b16 %v236, %v236
        %vm246 = vcmask 588800
        %v248 = vsel %vm246, %v218, 0
        %vm250 = vcmask 1043456
        %v252 = vsel %vm250, %v241, 0
        %254 = vmatprep.subr.bf16.mxu0 0
        %255 = vmatpush1.bf16.msra.mxu0 %v237
        %256 = vmatprep.subr.bf16.mxu0 0
        %257 = vmatpush1.bf16.msra.mxu0 %v238
        %258 = vmatprep.subr.bf16.mxu0 0
        %259 = vmatpush1.bf16.msra.mxu0 %v239
        %260 = vmatprep.subr.bf16.mxu0 0
        %261 = vmatpush1.bf16.msra.mxu0 %v240
        %262 = vmatprep.subr.bf16.mxu0 0
        %263 = vmatpush1.bf16.msra.mxu0 %v252
        %264 = vmatprep.subr.bf16.mxu0 0
        %265 = vmatpush1.bf16.msra.mxu0 0
        %266 = vmatprep.subr.bf16.mxu0 0
        %267 = vmatpush1.bf16.msra.mxu0 0
        %268 = vmatprep.subr.bf16.mxu0 0
        %269 = vmatpush1.bf16.msra.mxu0 0
        %270 = vmatprep.subr.bf16.mxu0 0
        %271 = vmatpush1.bf16.msra.mxu0 0
        %272 = vmatprep.subr.bf16.mxu0 0
        %273 = vmatpush1.bf16.msra.mxu0 0
        %274 = vmatprep.subr.bf16.mxu0 0
        %275 = vmatpush1.bf16.msra.mxu0 0
        %276 = vmatprep.subr.bf16.mxu0 0
        %277 = vmatpush1.bf16.msra.mxu0 0
        %278 = vmatprep.subr.bf16.mxu0 0
        %279 = vmatpush1.bf16.msra.mxu0 0
        %280 = vmatprep.subr.bf16.mxu0 0
        %281 = vmatpush1.bf16.msra.mxu0 0
        %282 = vmatprep.subr.bf16.mxu0 0
        %283 = vmatpush1.bf16.msra.mxu0 0
        %284 = vmatprep.subr.bf16.mxu0 0
        %285 = vmatpush1.bf16.msra.mxu0 0
        %286 = vmatprep.mubr.bf16.mxu0 0
        %287 = vmatmul.mubr.bf16.gmra.mrb[0].mxu0 %v248
        %v288 = vpop.f32.mrb[0].mxu0
        %v289 = vadd.f32 0.0, %v288
        %v290 = vpop.f32.mrb[0].mxu0
        %v291 = vpop.f32.mrb[0].mxu0
        %v292 = vadd.f32 0.0, %v291
        %v293 = vpop.f32.mrb[0].mxu0
        %294 = vdwg.mxu0
        %v304 = vunpack.c.l.b16 %v187
        %v305 = vunpack.c.l.b16 %v188
        %v306 = vunpack.c.l.b16 %v189
        %v307 = vunpack.c.l.b16 %v190
        %v308 = vunpack.c.l.b16 %v191
        %v309 = vunpack.c.l.b16 %v192
        %v310 = vunpack.c.l.b16 %v193
        %v311 = vunpack.c.l.b16 %v194
        %v312 = vunpack.c.l.b16 %v195
        %v313 = vpack.c.b16 %v305, %v304
        %v314 = vpack.c.b16 %v307, %v306
        %v315 = vpack.c.b16 %v309, %v308
        %v316 = vpack.c.b16 %v311, %v310
        %v317 = vpack.c.b16 %v312, %v312
        %v322 = vsel %vm246, %v185, 0
        %v325 = vsel %vm250, %v317, 0
        %327 = vmatprep.subr.bf16.mxu0 0
        %328 = vmatpush1.bf16.msra.mxu0 %v313
        %329 = vmatprep.subr.bf16.mxu0 0
        %330 = vmatpush1.bf16.msra.mxu0 %v314
        %331 = vmatprep.subr.bf16.mxu0 0
        %332 = vmatpush1.bf16.msra.mxu0 %v315
        %333 = vmatprep.subr.bf16.mxu0 0
        %334 = vmatpush1.bf16.msra.mxu0 %v316
        %335 = vmatprep.subr.bf16.mxu0 0
        %336 = vmatpush1.bf16.msra.mxu0 %v325
        %337 = vmatprep.subr.bf16.mxu0 0
        %338 = vmatpush1.bf16.msra.mxu0 0
        %339 = vmatprep.subr.bf16.mxu0 0
        %340 = vmatpush1.bf16.msra.mxu0 0
        %341 = vmatprep.subr.bf16.mxu0 0
        %342 = vmatpush1.bf16.msra.mxu0 0
        %343 = vmatprep.subr.bf16.mxu0 0
        %344 = vmatpush1.bf16.msra.mxu0 0
        %345 = vmatprep.subr.bf16.mxu0 0
        %346 = vmatpush1.bf16.msra.mxu0 0
        %347 = vmatprep.subr.bf16.mxu0 0
        %348 = vmatpush1.bf16.msra.mxu0 0
        %349 = vmatprep.subr.bf16.mxu0 0
        %350 = vmatpush1.bf16.msra.mxu0 0
        %351 = vmatprep.subr.bf16.mxu0 0
        %352 = vmatpush1.bf16.msra.mxu0 0
        %353 = vmatprep.subr.bf16.mxu0 0
        %354 = vmatpush1.bf16.msra.mxu0 0
        %355 = vmatprep.subr.bf16.mxu0 0
        %356 = vmatpush1.bf16.msra.mxu0 0
        %357 = vmatprep.subr.bf16.mxu0 0
        %358 = vmatpush1.bf16.msra.mxu0 0
        %359 = vmatprep.mubr.bf16.mxu0 0
        %360 = vmatmul.mubr.bf16.gmra.mrb[0].mxu0 %v322
        %v361 = vpop.f32.mrb[0].mxu0
        %v362 = vadd.f32 %v289, %v361
        %v363 = vpop.f32.mrb[0].mxu0
        %v364 = vpop.f32.mrb[0].mxu0
        %v365 = vadd.f32 %v292, %v364
        %v366 = vpop.f32.mrb[0].mxu0
        %367 = vdwg.mxu0
        %s368 = scalar_lea.vmem [#allocation2], 72
        %v369 = vld [vmem:[%s368] sm:$0xf]
        %v370 = vld [vmem:[%s368 + $0x4] sm:$0xf]
        %v371 = vld [vmem:[%s368 + $0x8] sm:$0xf]
        %v372 = vld [vmem:[%s368 + $0xc] sm:$0xf]
        %v373 = vld [vmem:[%s368 + $0x10] sm:$0xf]
        %v374 = vld [vmem:[%s368 + $0x14] sm:$0xf]
        %v375 = vld [vmem:[%s368 + $0x18] sm:$0xf]
        %v376 = vld [vmem:[%s368 + $0x1c] sm:$0xf]
        %v377 = vld [vmem:[%s368 + $0x20] sm:$0xf]
        %vm380 = vcmask 1046528
        %v381 = vrot.slane %v185, 1
        %v382 = vrot.slane %v186, 1
        %v383 = vsel %vm380, %v381, %v382
        %v393 = vunpack.c.l.b16 %v369
        %v394 = vunpack.c.l.b16 %v370
        %v395 = vunpack.c.l.b16 %v371
        %v396 = vunpack.c.l.b16 %v372
        %v397 = vunpack.c.l.b16 %v373
        %v398 = vunpack.c.l.b16 %v374
        %v399 = vunpack.c.l.b16 %v375
        %v400 = vunpack.c.l.b16 %v376
        %v401 = vunpack.c.l.b16 %v377
        %v402 = vpack.c.b16 %v394, %v393
        %v403 = vpack.c.b16 %v396, %v395
        %v404 = vpack.c.b16 %v398, %v397
        %v405 = vpack.c.b16 %v400, %v399
        %v406 = vpack.c.b16 %v401, %v401
        %v412 = vsel %vm246, %v383, 0
        %v415 = vsel %vm250, %v406, 0
        %417 = vmatprep.subr.bf16.mxu0 0
        %418 = vmatpush1.bf16.msra.mxu0 %v402
        %419 = vmatprep.subr.bf16.mxu0 0
        %420 = vmatpush1.bf16.msra.mxu0 %v403
        %421 = vmatprep.subr.bf16.mxu0 0
        %422 = vmatpush1.bf16.msra.mxu0 %v404
        %423 = vmatprep.subr.bf16.mxu0 0
        %424 = vmatpush1.bf16.msra.mxu0 %v405
        %425 = vmatprep.subr.bf16.mxu0 0
        %426 = vmatpush1.bf16.msra.mxu0 %v415
        %427 = vmatprep.subr.bf16.mxu0 0
        %428 = vmatpush1.bf16.msra.mxu0 0
        %429 = vmatprep.subr.bf16.mxu0 0
        %430 = vmatpush1.bf16.msra.mxu0 0
        %431 = vmatprep.subr.bf16.mxu0 0
        %432 = vmatpush1.bf16.msra.mxu0 0
        %433 = vmatprep.subr.bf16.mxu0 0
        %434 = vmatpush1.bf16.msra.mxu0 0
        %435 = vmatprep.subr.bf16.mxu0 0
        %436 = vmatpush1.bf16.msra.mxu0 0
        %437 = vmatprep.subr.bf16.mxu0 0
        %438 = vmatpush1.bf16.msra.mxu0 0
        %439 = vmatprep.subr.bf16.mxu0 0
        %440 = vmatpush1.bf16.msra.mxu0 0
        %441 = vmatprep.subr.bf16.mxu0 0
        %442 = vmatpush1.bf16.msra.mxu0 0
        %443 = vmatprep.subr.bf16.mxu0 0
        %444 = vmatpush1.bf16.msra.mxu0 0
        %445 = vmatprep.subr.bf16.mxu0 0
        %446 = vmatpush1.bf16.msra.mxu0 0
        %447 = vmatprep.subr.bf16.mxu0 0
        %448 = vmatpush1.bf16.msra.mxu0 0
        %449 = vmatprep.mubr.bf16.mxu0 0
        %450 = vmatmul.mubr.bf16.gmra.mrb[0].mxu0 %v412
        %v451 = vpop.f32.mrb[0].mxu0
        %v452 = vadd.f32 0.0, %v451
        %v453 = vpop.f32.mrb[0].mxu0
        %v454 = vpop.f32.mrb[0].mxu0
        %v455 = vadd.f32 0.0, %v454
        %v456 = vpop.f32.mrb[0].mxu0
        %457 = vdwg.mxu0
        %v458 = vadd.f32 %v362, %v452
        %v459 = vadd.f32 %v365, %v455
        %v460 = vmax.f32 %v458, 0.0
        %v461 = vmax.f32 %v459, 0.0
        %v462 = vadd.f32 %v460, 0.0
        %v463 = vadd.f32 %v461, 0.0
        %s464 = scalar_lea.vmem [#allocation2], 108
        %v465 = vld [vmem:[%s464] sm:$0xf]
        %v466 = vld [vmem:[%s464 + $0x4] sm:$0xf]
        %v467 = vld [vmem:[%s464 + $0x8] sm:$0xf]
        %v468 = vld [vmem:[%s464 + $0xc] sm:$0xf]
        %v469 = vld [vmem:[%s464 + $0x10] sm:$0xf]
        %v470 = vld [vmem:[%s464 + $0x14] sm:$0xf]
        %v471 = vld [vmem:[%s464 + $0x18] sm:$0xf]
        %v472 = vld [vmem:[%s464 + $0x1c] sm:$0xf]
        %v473 = vld [vmem:[%s464 + $0x20] sm:$0xf]
        %s474 = scalar_lea.vmem [#allocation2], 144
        %v475 = vld [vmem:[%s474] sm:$0xf]
        %v476 = vld [vmem:[%s474 + $0x4] sm:$0xf]
        %v477 = vld [vmem:[%s474 + $0x8] sm:$0xf]
        %v478 = vld [vmem:[%s474 + $0xc] sm:$0xf]
        %v479 = vld [vmem:[%s474 + $0x10] sm:$0xf]
        %v480 = vld [vmem:[%s474 + $0x14] sm:$0xf]
        %v481 = vld [vmem:[%s474 + $0x18] sm:$0xf]
        %v482 = vld [vmem:[%s474 + $0x1c] sm:$0xf]
        %v483 = vld [vmem:[%s474 + $0x20] sm:$0xf]
        %v493 = vunpack.c.l.b16 %v475
        %v494 = vunpack.c.l.b16 %v476
        %v495 = vunpack.c.l.b16 %v477
        %v496 = vunpack.c.l.b16 %v478
        %v497 = vunpack.c.l.b16 %v479
        %v498 = vunpack.c.l.b16 %v480
        %v499 = vunpack.c.l.b16 %v481
        %v500 = vunpack.c.l.b16 %v482
        %v501 = vunpack.c.l.b16 %v483
        %v502 = vpack.c.b16 %v494, %v493
        %v503 = vpack.c.b16 %v496, %v495
        %v504 = vpack.c.b16 %v498, %v497
        %v505 = vpack.c.b16 %v500, %v499
        %v506 = vpack.c.b16 %v501, %v501
        %v512 = vsel %vm250, %v506, 0
        %514 = vmatprep.subr.bf16.mxu0 0
        %515 = vmatpush1.bf16.msra.mxu0 %v502
        %516 = vmatprep.subr.bf16.mxu0 0
        %517 = vmatpush1.bf16.msra.mxu0 %v503
        %518 = vmatprep.subr.bf16.mxu0 0
        %519 = vmatpush1.bf16.msra.mxu0 %v504
        %520 = vmatprep.subr.bf16.mxu0 0
        %521 = vmatpush1.bf16.msra.mxu0 %v505
        %522 = vmatprep.subr.bf16.mxu0 0
        %523 = vmatpush1.bf16.msra.mxu0 %v512
        %524 = vmatprep.subr.bf16.mxu0 0
        %525 = vmatpush1.bf16.msra.mxu0 0
        %526 = vmatprep.subr.bf16.mxu0 0
        %527 = vmatpush1.bf16.msra.mxu0 0
        %528 = vmatprep.subr.bf16.mxu0 0
        %529 = vmatpush1.bf16.msra.mxu0 0
        %530 = vmatprep.subr.bf16.mxu0 0
        %531 = vmatpush1.bf16.msra.mxu0 0
        %532 = vmatprep.subr.bf16.mxu0 0
        %533 = vmatpush1.bf16.msra.mxu0 0
        %534 = vmatprep.subr.bf16.mxu0 0
        %535 = vmatpush1.bf16.msra.mxu0 0
        %536 = vmatprep.subr.bf16.mxu0 0
        %537 = vmatpush1.bf16.msra.mxu0 0
        %538 = vmatprep.subr.bf16.mxu0 0
        %539 = vmatpush1.bf16.msra.mxu0 0
        %540 = vmatprep.subr.bf16.mxu0 0
        %541 = vmatpush1.bf16.msra.mxu0 0
        %542 = vmatprep.subr.bf16.mxu0 0
        %543 = vmatpush1.bf16.msra.mxu0 0
        %544 = vmatprep.subr.bf16.mxu0 0
        %545 = vmatpush1.bf16.msra.mxu0 0
        %546 = vmatprep.mubr.bf16.mxu0 0
        %547 = vmatmul.mubr.bf16.gmra.mrb[0].mxu0 %v248
        %v548 = vpop.f32.mrb[0].mxu0
        %v549 = vadd.f32 0.0, %v548
        %v550 = vpop.f32.mrb[0].mxu0
        %v551 = vpop.f32.mrb[0].mxu0
        %v552 = vadd.f32 0.0, %v551
        %v553 = vpop.f32.mrb[0].mxu0
        %554 = vdwg.mxu0
        %v564 = vunpack.c.l.b16 %v465
        %v565 = vunpack.c.l.b16 %v466
        %v566 = vunpack.c.l.b16 %v467
        %v567 = vunpack.c.l.b16 %v468
        %v568 = vunpack.c.l.b16 %v469
        %v569 = vunpack.c.l.b16 %v470
        %v570 = vunpack.c.l.b16 %v471
        %v571 = vunpack.c.l.b16 %v472
        %v572 = vunpack.c.l.b16 %v473
        %v573 = vpack.c.b16 %v565, %v564
        %v574 = vpack.c.b16 %v567, %v566
        %v575 = vpack.c.b16 %v569, %v568
        %v576 = vpack.c.b16 %v571, %v570
        %v577 = vpack.c.b16 %v572, %v572
        %v583 = vsel %vm250, %v577, 0
        %585 = vmatprep.subr.bf16.mxu0 0
        %586 = vmatpush1.bf16.msra.mxu0 %v573
        %587 = vmatprep.subr.bf16.mxu0 0
        %588 = vmatpush1.bf16.msra.mxu0 %v574
        %589 = vmatprep.subr.bf16.mxu0 0
        %590 = vmatpush1.bf16.msra.mxu0 %v575
        %591 = vmatprep.subr.bf16.mxu0 0
        %592 = vmatpush1.bf16.msra.mxu0 %v576
        %593 = vmatprep.subr.bf16.mxu0 0
        %594 = vmatpush1.bf16.msra.mxu0 %v583
        %595 = vmatprep.subr.bf16.mxu0 0
        %596 = vmatpush1.bf16.msra.mxu0 0
        %597 = vmatprep.subr.bf16.mxu0 0
        %598 = vmatpush1.bf16.msra.mxu0 0
        %599 = vmatprep.subr.bf16.mxu0 0
        %600 = vmatpush1.bf16.msra.mxu0 0
        %601 = vmatprep.subr.bf16.mxu0 0
        %602 = vmatpush1.bf16.msra.mxu0 0
        %603 = vmatprep.subr.bf16.mxu0 0
        %604 = vmatpush1.bf16.msra.mxu0 0
        %605 = vmatprep.subr.bf16.mxu0 0
        %606 = vmatpush1.bf16.msra.mxu0 0
        %607 = vmatprep.subr.bf16.mxu0 0
        %608 = vmatpush1.bf16.msra.mxu0 0
        %609 = vmatprep.subr.bf16.mxu0 0
        %610 = vmatpush1.bf16.msra.mxu0 0
        %611 = vmatprep.subr.bf16.mxu0 0
        %612 = vmatpush1.bf16.msra.mxu0 0
        %613 = vmatprep.subr.bf16.mxu0 0
        %614 = vmatpush1.bf16.msra.mxu0 0
        %615 = vmatprep.subr.bf16.mxu0 0
        %616 = vmatpush1.bf16.msra.mxu0 0
        %617 = vmatprep.mubr.bf16.mxu0 0
        %618 = vmatmul.mubr.bf16.gmra.mrb[0].mxu0 %v322
        %v619 = vpop.f32.mrb[0].mxu0
        %v620 = vadd.f32 %v549, %v619
        %v621 = vpop.f32.mrb[0].mxu0
        %v622 = vpop.f32.mrb[0].mxu0
        %v623 = vadd.f32 %v552, %v622
        %v624 = vpop.f32.mrb[0].mxu0
        %625 = vdwg.mxu0
        %s626 = scalar_lea.vmem [#allocation2], 180
        %v627 = vld [vmem:[%s626] sm:$0xf]
        %v628 = vld [vmem:[%s626 + $0x4] sm:$0xf]
        %v629 = vld [vmem:[%s626 + $0x8] sm:$0xf]
        %v630 = vld [vmem:[%s626 + $0xc] sm:$0xf]
        %v631 = vld [vmem:[%s626 + $0x10] sm:$0xf]
        %v632 = vld [vmem:[%s626 + $0x14] sm:$0xf]
        %v633 = vld [vmem:[%s626 + $0x18] sm:$0xf]
        %v634 = vld [vmem:[%s626 + $0x1c] sm:$0xf]
        %v635 = vld [vmem:[%s626 + $0x20] sm:$0xf]
        %v645 = vunpack.c.l.b16 %v627
        %v646 = vunpack.c.l.b16 %v628
        %v647 = vunpack.c.l.b16 %v629
        %v648 = vunpack.c.l.b16 %v630
        %v649 = vunpack.c.l.b16 %v631
        %v650 = vunpack.c.l.b16 %v632
        %v651 = vunpack.c.l.b16 %v633
        %v652 = vunpack.c.l.b16 %v634
        %v653 = vunpack.c.l.b16 %v635
        %v654 = vpack.c.b16 %v646, %v645
        %v655 = vpack.c.b16 %v648, %v647
        %v656 = vpack.c.b16 %v650, %v649
        %v657 = vpack.c.b16 %v652, %v651
        %v658 = vpack.c.b16 %v653, %v653
        %v664 = vsel %vm250, %v658, 0
        %666 = vmatprep.subr.bf16.mxu0 0
        %667 = vmatpush1.bf16.msra.mxu0 %v654
        %668 = vmatprep.subr.bf16.mxu0 0
        %669 = vmatpush1.bf16.msra.mxu0 %v655
        %670 = vmatprep.subr.bf16.mxu0 0
        %671 = vmatpush1.bf16.msra.mxu0 %v656
        %672 = vmatprep.subr.bf16.mxu0 0
        %673 = vmatpush1.bf16.msra.mxu0 %v657
        %674 = vmatprep.subr.bf16.mxu0 0
        %675 = vmatpush1.bf16.msra.mxu0 %v664
        %676 = vmatprep.subr.bf16.mxu0 0
        %677 = vmatpush1.bf16.msra.mxu0 0
        %678 = vmatprep.subr.bf16.mxu0 0
        %679 = vmatpush1.bf16.msra.mxu0 0
        %680 = vmatprep.subr.bf16.mxu0 0
        %681 = vmatpush1.bf16.msra.mxu0 0
        %682 = vmatprep.subr.bf16.mxu0 0
        %683 = vmatpush1.bf16.msra.mxu0 0
        %684 = vmatprep.subr.bf16.mxu0 0
        %685 = vmatpush1.bf16.msra.mxu0 0
        %686 = vmatprep.subr.bf16.mxu0 0
        %687 = vmatpush1.bf16.msra.mxu0 0
        %688 = vmatprep.subr.bf16.mxu0 0
        %689 = vmatpush1.bf16.msra.mxu0 0
        %690 = vmatprep.subr.bf16.mxu0 0
        %691 = vmatpush1.bf16.msra.mxu0 0
        %692 = vmatprep.subr.bf16.mxu0 0
        %693 = vmatpush1.bf16.msra.mxu0 0
        %694 = vmatprep.subr.bf16.mxu0 0
        %695 = vmatpush1.bf16.msra.mxu0 0
        %696 = vmatprep.subr.bf16.mxu0 0
        %697 = vmatpush1.bf16.msra.mxu0 0
        %698 = vmatprep.mubr.bf16.mxu0 0
        %699 = vmatmul.mubr.bf16.gmra.mrb[0].mxu0 %v412
        %v700 = vpop.f32.mrb[0].mxu0
        %v701 = vadd.f32 0.0, %v700
        %v702 = vpop.f32.mrb[0].mxu0
        %v703 = vpop.f32.mrb[0].mxu0
        %v704 = vadd.f32 0.0, %v703
        %v705 = vpop.f32.mrb[0].mxu0
        %706 = vdwg.mxu0
        %v707 = vadd.f32 %v620, %v701
        %v708 = vadd.f32 %v623, %v704
        %v709 = vmax.f32 %v707, 0.0
        %v710 = vmax.f32 %v708, 0.0
        %v711 = vadd.f32 %v462, %v709
        %v712 = vadd.f32 %v463, %v710
        %s713 = scalar_lea.vmem [#allocation2], 216
        %v714 = vld [vmem:[%s713] sm:$0xf]
        %v715 = vld [vmem:[%s713 + $0x4] sm:$0xf]
        %v716 = vld [vmem:[%s713 + $0x8] sm:$0xf]
        %v717 = vld [vmem:[%s713 + $0xc] sm:$0xf]
        %v718 = vld [vmem:[%s713 + $0x10] sm:$0xf]
        %v719 = vld [vmem:[%s713 + $0x14] sm:$0xf]
        %v720 = vld [vmem:[%s713 + $0x18] sm:$0xf]
        %v721 = vld [vmem:[%s713 + $0x1c] sm:$0xf]
        %v722 = vld [vmem:[%s713 + $0x20] sm:$0xf]
        %s723 = scalar_lea.vmem [#allocation2], 252
        %v724 = vld [vmem:[%s723] sm:$0xf]
        %v725 = vld [vmem:[%s723 + $0x4] sm:$0xf]
        %v726 = vld [vmem:[%s723 + $0x8] sm:$0xf]
        %v727 = vld [vmem:[%s723 + $0xc] sm:$0xf]
        %v728 = vld [vmem:[%s723 + $0x10] sm:$0xf]
        %v729 = vld [vmem:[%s723 + $0x14] sm:$0xf]
        %v730 = vld [vmem:[%s723 + $0x18] sm:$0xf]
        %v731 = vld [vmem:[%s723 + $0x1c] sm:$0xf]
        %v732 = vld [vmem:[%s723 + $0x20] sm:$0xf]
        %v742 = vunpack.c.l.b16 %v724
        %v743 = vunpack.c.l.b16 %v725
        %v744 = vunpack.c.l.b16 %v726
        %v745 = vunpack.c.l.b16 %v727
        %v746 = vunpack.c.l.b16 %v728
        %v747 = vunpack.c.l.b16 %v729
        %v748 = vunpack.c.l.b16 %v730
        %v749 = vunpack.c.l.b16 %v731
        %v750 = vunpack.c.l.b16 %v732
        %v751 = vpack.c.b16 %v743, %v742
        %v752 = vpack.c.b16 %v745, %v744
        %v753 = vpack.c.b16 %v747, %v746
        %v754 = vpack.c.b16 %v749, %v748
        %v755 = vpack.c.b16 %v750, %v750
        %v761 = vsel %vm250, %v755, 0
        %763 = vmatprep.subr.bf16.mxu0 0
        %764 = vmatpush1.bf16.msra.mxu0 %v751
        %765 = vmatprep.subr.bf16.mxu0 0
        %766 = vmatpush1.bf16.msra.mxu0 %v752
        %767 = vmatprep.subr.bf16.mxu0 0
        %768 = vmatpush1.bf16.msra.mxu0 %v753
        %769 = vmatprep.subr.bf16.mxu0 0
        %770 = vmatpush1.bf16.msra.mxu0 %v754
        %771 = vmatprep.subr.bf16.mxu0 0
        %772 = vmatpush1.bf16.msra.mxu0 %v761
        %773 = vmatprep.subr.bf16.mxu0 0
        %774 = vmatpush1.bf16.msra.mxu0 0
        %775 = vmatprep.subr.bf16.mxu0 0
        %776 = vmatpush1.bf16.msra.mxu0 0
        %777 = vmatprep.subr.bf16.mxu0 0
        %778 = vmatpush1.bf16.msra.mxu0 0
        %779 = vmatprep.subr.bf16.mxu0 0
        %780 = vmatpush1.bf16.msra.mxu0 0
        %781 = vmatprep.subr.bf16.mxu0 0
        %782 = vmatpush1.bf16.msra.mxu0 0
        %783 = vmatprep.subr.bf16.mxu0 0
        %784 = vmatpush1.bf16.msra.mxu0 0
        %785 = vmatprep.subr.bf16.mxu0 0
        %786 = vmatpush1.bf16.msra.mxu0 0
        %787 = vmatprep.subr.bf16.mxu0 0
        %788 = vmatpush1.bf16.msra.mxu0 0
        %789 = vmatprep.subr.bf16.mxu0 0
        %790 = vmatpush1.bf16.msra.mxu0 0
        %791 = vmatprep.subr.bf16.mxu0 0
        %792 = vmatpush1.bf16.msra.mxu0 0
        %793 = vmatprep.subr.bf16.mxu0 0
        %794 = vmatpush1.bf16.msra.mxu0 0
        %795 = vmatprep.mubr.bf16.mxu0 0
        %796 = vmatmul.mubr.bf16.gmra.mrb[0].mxu0 %v248
        %v797 = vpop.f32.mrb[0].mxu0
        %v798 = vadd.f32 0.0, %v797
        %v799 = vpop.f32.mrb[0].mxu0
        %v800 = vpop.f32.mrb[0].mxu0
        %v801 = vadd.f32 0.0, %v800
        %v802 = vpop.f32.mrb[0].mxu0
        %803 = vdwg.mxu0
        %v813 = vunpack.c.l.b16 %v714
        %v814 = vunpack.c.l.b16 %v715
        %v815 = vunpack.c.l.b16 %v716
        %v816 = vunpack.c.l.b16 %v717
        %v817 = vunpack.c.l.b16 %v718
        %v818 = vunpack.c.l.b16 %v719
        %v819 = vunpack.c.l.b16 %v720
        %v820 = vunpack.c.l.b16 %v721
        %v821 = vunpack.c.l.b16 %v722
        %v822 = vpack.c.b16 %v814, %v813
        %v823 = vpack.c.b16 %v816, %v815
        %v824 = vpack.c.b16 %v818, %v817
        %v825 = vpack.c.b16 %v820, %v819
        %v826 = vpack.c.b16 %v821, %v821
        %v832 = vsel %vm250, %v826, 0
        %834 = vmatprep.subr.bf16.mxu0 0
        %835 = vmatpush1.bf16.msra.mxu0 %v822
        %836 = vmatprep.subr.bf16.mxu0 0
        %837 = vmatpush1.bf16.msra.mxu0 %v823
        %838 = vmatprep.subr.bf16.mxu0 0
        %839 = vmatpush1.bf16.msra.mxu0 %v824
        %840 = vmatprep.subr.bf16.mxu0 0
        %841 = vmatpush1.bf16.msra.mxu0 %v825
        %842 = vmatprep.subr.bf16.mxu0 0
        %843 = vmatpush1.bf16.msra.mxu0 %v832
        %844 = vmatprep.subr.bf16.mxu0 0
        %845 = vmatpush1.bf16.msra.mxu0 0
        %846 = vmatprep.subr.bf16.mxu0 0
        %847 = vmatpush1.bf16.msra.mxu0 0
        %848 = vmatprep.subr.bf16.mxu0 0
        %849 = vmatpush1.bf16.msra.mxu0 0
        %850 = vmatprep.subr.bf16.mxu0 0
        %851 = vmatpush1.bf16.msra.mxu0 0
        %852 = vmatprep.subr.bf16.mxu0 0
        %853 = vmatpush1.bf16.msra.mxu0 0
        %854 = vmatprep.subr.bf16.mxu0 0
        %855 = vmatpush1.bf16.msra.mxu0 0
        %856 = vmatprep.subr.bf16.mxu0 0
        %857 = vmatpush1.bf16.msra.mxu0 0
        %858 = vmatprep.subr.bf16.mxu0 0
        %859 = vmatpush1.bf16.msra.mxu0 0
        %860 = vmatprep.subr.bf16.mxu0 0
        %861 = vmatpush1.bf16.msra.mxu0 0
        %862 = vmatprep.subr.bf16.mxu0 0
        %863 = vmatpush1.bf16.msra.mxu0 0
        %864 = vmatprep.subr.bf16.mxu0 0
        %865 = vmatpush1.bf16.msra.mxu0 0
        %866 = vmatprep.mubr.bf16.mxu0 0
        %867 = vmatmul.mubr.bf16.gmra.mrb[0].mxu0 %v322
        %v868 = vpop.f32.mrb[0].mxu0
        %v869 = vadd.f32 %v798, %v868
        %v870 = vpop.f32.mrb[0].mxu0
        %v871 = vpop.f32.mrb[0].mxu0
        %v872 = vadd.f32 %v801, %v871
        %v873 = vpop.f32.mrb[0].mxu0
        %874 = vdwg.mxu0
        %s875 = scalar_lea.vmem [#allocation2], 288
        %v876 = vld [vmem:[%s875] sm:$0xf]
        %v877 = vld [vmem:[%s875 + $0x4] sm:$0xf]
        %v878 = vld [vmem:[%s875 + $0x8] sm:$0xf]
        %v879 = vld [vmem:[%s875 + $0xc] sm:$0xf]
        %v880 = vld [vmem:[%s875 + $0x10] sm:$0xf]
        %v881 = vld [vmem:[%s875 + $0x14] sm:$0xf]
        %v882 = vld [vmem:[%s875 + $0x18] sm:$0xf]
        %v883 = vld [vmem:[%s875 + $0x1c] sm:$0xf]
        %v884 = vld [vmem:[%s875 + $0x20] sm:$0xf]
        %v894 = vunpack.c.l.b16 %v876
        %v895 = vunpack.c.l.b16 %v877
        %v896 = vunpack.c.l.b16 %v878
        %v897 = vunpack.c.l.b16 %v879
        %v898 = vunpack.c.l.b16 %v880
        %v899 = vunpack.c.l.b16 %v881
        %v900 = vunpack.c.l.b16 %v882
        %v901 = vunpack.c.l.b16 %v883
        %v902 = vunpack.c.l.b16 %v884
        %v903 = vpack.c.b16 %v895, %v894
        %v904 = vpack.c.b16 %v897, %v896
        %v905 = vpack.c.b16 %v899, %v898
        %v906 = vpack.c.b16 %v901, %v900
        %v907 = vpack.c.b16 %v902, %v902
        %v913 = vsel %vm250, %v907, 0
        %915 = vmatprep.subr.bf16.mxu0 0
        %916 = vmatpush1.bf16.msra.mxu0 %v903
        %917 = vmatprep.subr.bf16.mxu0 0
        %918 = vmatpush1.bf16.msra.mxu0 %v904
        %919 = vmatprep.subr.bf16.mxu0 0
        %920 = vmatpush1.bf16.msra.mxu0 %v905
        %921 = vmatprep.subr.bf16.mxu0 0
        %922 = vmatpush1.bf16.msra.mxu0 %v906
        %923 = vmatprep.subr.bf16.mxu0 0
        %924 = vmatpush1.bf16.msra.mxu0 %v913
        %925 = vmatprep.subr.bf16.mxu0 0
        %926 = vmatpush1.bf16.msra.mxu0 0
        %927 = vmatprep.subr.bf16.mxu0 0
        %928 = vmatpush1.bf16.msra.mxu0 0
        %929 = vmatprep.subr.bf16.mxu0 0
        %930 = vmatpush1.bf16.msra.mxu0 0
        %931 = vmatprep.subr.bf16.mxu0 0
        %932 = vmatpush1.bf16.msra.mxu0 0
        %933 = vmatprep.subr.bf16.mxu0 0
        %934 = vmatpush1.bf16.msra.mxu0 0
        %935 = vmatprep.subr.bf16.mxu0 0
        %936 = vmatpush1.bf16.msra.mxu0 0
        %937 = vmatprep.subr.bf16.mxu0 0
        %938 = vmatpush1.bf16.msra.mxu0 0
        %939 = vmatprep.subr.bf16.mxu0 0
        %940 = vmatpush1.bf16.msra.mxu0 0
        %941 = vmatprep.subr.bf16.mxu0 0
        %942 = vmatpush1.bf16.msra.mxu0 0
        %943 = vmatprep.subr.bf16.mxu0 0
        %944 = vmatpush1.bf16.msra.mxu0 0
        %945 = vmatprep.subr.bf16.mxu0 0
        %946 = vmatpush1.bf16.msra.mxu0 0
        %947 = vmatprep.mubr.bf16.mxu0 0
        %948 = vmatmul.mubr.bf16.gmra.mrb[0].mxu0 %v412
        %v949 = vpop.f32.mrb[0].mxu0
        %v950 = vadd.f32 0.0, %v949
        %v951 = vpop.f32.mrb[0].mxu0
        %v952 = vpop.f32.mrb[0].mxu0
        %v953 = vadd.f32 0.0, %v952
        %v954 = vpop.f32.mrb[0].mxu0
        %955 = vdwg.mxu0
        %v956 = vadd.f32 %v869, %v950
        %v957 = vadd.f32 %v872, %v953
        %v958 = vmax.f32 %v956, 0.0
        %v959 = vmax.f32 %v957, 0.0
        %v960 = vadd.f32 %v711, %v958
        %v961 = vadd.f32 %v712, %v959
        %962 = vst [vmem:[%s172] sm:$0xff] %v960
        %963 = vst [vmem:[%s172 + $0x8] sm:$0xff] %v961
        %s964 = sand.u32 %s91, 1
        %s965 = scalar_lea.sflag [#allocation4], %s964
        %s966 = sand.u32 %s91, 1
        %s967 = smul.addr %s966, 16
        %s968 = scalar_lea.vmem [#allocation5], %s967
        // Predicated region
        $region33: #{tpu_custom_call.1} parent=27 // pred_check
          %p969 = pneg %p101
        $region34: #{tpu_custom_call.1} parent=27 // pred_check_branch
          %971 = sbr.rel (%p969) target = $region36
        $region35: #{tpu_custom_call.1} parent=27 // pred_region
          %s973 = ssub.s32 256, 256
          %974 = vsyncadd %s965, %s973
          %s975 = smul.addr %s21, 2
          %s976 = sadd.s32 %s22, %s975
          %s977 = smul.addr %s976, 128
          %s978 = scalar_lea.hbm %s2, %s977
          %s979 = sshll.u32 %s968, 4
          %s980 = int_to_ptr.vmem [resolvable:$true] %s979
          %985 = dma.vmem_to_hbm [thread:$0]  %s980, 256, %s978, %s965, 128, 128, 8
        $region36: #{tpu_custom_call.1} parent=27 // pred_fallthru
          _
      $region28: #{tpu_custom_call.1} parent=5 // pred_fallthru
        _
      %p986 = scmp.le.s32.totalorder 2, %s12
      // Predicated region
      $region37: #{tpu_custom_call.1} parent=5 // pred_check
        %p987 = pneg %p986
      $region38: #{tpu_custom_call.1} parent=5 // pred_check_branch
        %989 = sbr.rel (%p987) target = $region40
      $region39: #{tpu_custom_call.1} parent=5 // pred_region
        %s990 = ssub.s32 %s12, 2
        // Predicated region
        $region41: #{tpu_custom_call.1} parent=39 // pred_check
          %p991 = pneg %p107
        $region42: #{tpu_custom_call.1} parent=39 // pred_check_branch
          %993 = sbr.rel (%p991) target = $region44
        $region43: #{tpu_custom_call.1} parent=39 // pred_region
          %s994 = sand.u32 %s92, 1
          %s995 = scalar_lea.sflag [#allocation4], %s994
          %s996 = sand.u32 %s92, 1
          %s997 = smul.addr %s996, 16
          %s998 = scalar_lea.vmem [#allocation5], %s997
          %999 = dma.done %s995, 256
        $region44: #{tpu_custom_call.1} parent=39 // pred_fallthru
          _
      $region40: #{tpu_custom_call.1} parent=5 // pred_fallthru
        _
    $region6: #{tpu_custom_call.1} parent=1 // loop_footer
      %s16 = sadd.s32 1, %s12
    $region7: #{tpu_custom_call.1} parent=1 // loop_footer_branch
      %11 = sbr.rel target = $region3
    $region8: #{tpu_custom_call.1} parent=1 // loop_exit
      _
    %1000 = vsyncpa [#allocation3], 1
    %s1001 = scalar_lea.sflag [#allocation3], 1
    %1002 = vsyncpa %s1001, 1
    %1003 = vsyncpa [#allocation4], 1
    %s1004 = scalar_lea.sflag [#allocation4], 1
    %1005 = vsyncpa %s1004, 1

</llo_original>
